<compile_context>
chip_gen: v5e
topology: v5e:2x2
jax: 0.10.0
libtpu: 0.0.40
codegen_flags: <defaults>
</compile_context>

<pallas_src>
import functools

import jax
import jax.numpy as jnp
from jax.experimental import pallas as pl
from jax.experimental.pallas import tpu as pltpu

KSIZE = 7
PAD = (KSIZE - 1) // 2  # 3


def _roll_last(v, shift, use_xlu):
    """Static circular roll along the last axis (jnp.roll semantics)."""
    n = v.shape[-1]
    s = shift % n
    if s == 0:
        return v
    if use_xlu:
        # Single XLU lane rotation; frees the VALU slot in the tap loop.
        return pltpu.roll(v, s, v.ndim - 1)
    # Fallback for lane-unaligned spatial sizes (H*W % 128 != 0).
    return jnp.concatenate([v[..., n - s:], v[..., :n - s]], axis=-1)


def spatial_gate_kernel(params_ref, col_ref, x_ref, o_ref, *, H, W,
                        use_xlu_roll):
    """One (TB, C, H*W) lane-dense block per grid step.

    params_ref : SMEM (2*49 + 1,) f32 -- BN-folded conv taps (max-channel
                 taps first, then mean-channel) followed by the folded bias.
    col_ref    : VMEM (1, H*W) int32  -- column index of every flat position.
    x_ref      : VMEM (TB, C, H*W)    -- input block (native dtype).
    o_ref      : VMEM (TB, C, H*W)    -- output block.
    """
    HW = H * W

    # --- ChannelPool: max on the native dtype, mean with f32 accumulation.
    # No full-block f32 copy stays live across the conv loop.
    x_nat = x_ref[...]
    max_p = jnp.max(x_nat, axis=1).astype(jnp.float32)           # (TB, HW)
    mean_p = jnp.mean(x_nat.astype(jnp.float32), axis=1)         # (TB, HW)

    col = col_ref[...]                                           # (1, HW)
    pos = jax.lax.broadcasted_iota(jnp.int32, (1, HW), 1)        # (1, HW)

    roll = functools.partial(_roll_last, use_xlu=use_xlu_roll)

    # --- Column pre-pass (separable 7x7): roll each pooled plane by the 7
    # horizontal offsets and fold the column-border mask in once.
    col_max, col_mean = [], []
    for dw in range(KSIZE):
        b = dw - PAD
        pm = roll(max_p, -b)
        pe = roll(mean_p, -b)
        if b != 0:
            cmask = ((col >= max(0, -b)) &
                     (col < min(W, W - b))).astype(jnp.float32)  # (1, HW)
            pm = pm * cmask
            pe = pe * cmask
        col_max.append(pm)
        col_mean.append(pe)

    # --- Row pass: per vertical offset, weighted sum of the 14 pre-shifted
    # planes, then one flat roll by a*W (column index is preserved under
    # rolls by multiples of W) and the row-border mask.
    acc = None
    for dh in range(KSIZE):
        a = dh - PAD
        tmp = None
        for dw in range(KSIZE):
            w_max = params_ref[dh * KSIZE + dw]                    # channel 0
            w_mean = params_ref[KSIZE * KSIZE + dh * KSIZE + dw]   # channel 1
            term = w_max * col_max[dw] + w_mean * col_mean[dw]
            tmp = term if tmp is None else tmp + term
        tmp = roll(tmp, -(a * W))
        if a != 0:
            rmask = ((pos >= max(0, -a) * W) &
                     (pos < min(H, H - a) * W)).astype(jnp.float32)
            tmp = tmp * rmask
        acc = tmp if acc is None else acc + tmp

    bias = params_ref[2 * KSIZE * KSIZE]
    scale = jax.nn.sigmoid(acc + bias)                           # (TB, HW) f32

    # Gate the input: broadcast the spatial scale across channels (sublanes).
    o_ref[...] = (x_ref[...] * scale[:, None, :].astype(x_ref.dtype)
                  ).astype(o_ref.dtype)


def _vmem_block_budget():
    """Per-generation VMEM budget for one block's pipeline + temporaries:
    ~1/3 of physical VMEM, capped at 48 MiB (v5e/v6e: 128 MiB -> ~42 MiB,
    v7x: 64 MiB -> ~21 MiB)."""
    cap = 64 * 1024 * 1024
    try:
        cap = int(getattr(pltpu.get_tpu_info(), "vmem_capacity_bytes", cap))
    except Exception:
        pass
    return max(16 * 1024 * 1024, min(48 * 1024 * 1024, cap // 3))


def _choose_batch_tile(B, per_image_vmem, budget, sublane):
    """Largest batch divisor whose VMEM footprint fits the budget; bump up to
    the sublane count when possible so pooled-plane math fills vregs.  No
    forced minimum number of grid steps."""
    divs = [d for d in range(1, B + 1) if B % d == 0]
    fitting = [d for d in divs if d * per_image_vmem <= budget]
    if not fitting:
        # TODO(synk): single image exceeds the block budget -- add an H*W
        # tiling path with a 3-row halo (matters first on v7x's 64 MiB VMEM).
        return 1
    tb = max(fitting)
    floor_tb = min(B, sublane)
    if tb < floor_tb:
        bigger = [d for d in divs
                  if d >= floor_tb and d * per_image_vmem <= 2 * budget]
        if bigger:
            tb = min(bigger)
    return tb


def spatial_gate(x, conv_w, bn_gamma, bn_beta, bn_mean, bn_var, eps=1e-5,
                 in_place=False):
    """x: (B, C, H, W). conv_w: (1, 2, 7, 7). BN params: shape (1,)."""
    B, C, H, W = x.shape
    HW = H * W
    itemsize = x.dtype.itemsize

    # Fold inference-mode BatchNorm into the bias-free conv:
    #   bn(conv(p)) = conv(p)*s + t,  s = gamma/sqrt(var+eps), t = beta - mean*s
    s = bn_gamma.astype(jnp.float32) / jnp.sqrt(bn_var.astype(jnp.float32) + eps)
    t = bn_beta.astype(jnp.float32) - bn_mean.astype(jnp.float32) * s
    w_scaled = (conv_w.astype(jnp.float32) * s.reshape(1, 1, 1, 1)).reshape(-1)
    params = jnp.concatenate([w_scaled, t]).astype(jnp.float32)      # (99,)

    # Tiny column-index input (4*HW bytes, fetched once); row masks are built
    # fully in-kernel from a flat iota.
    col_idx = (jnp.arange(HW, dtype=jnp.int32) % jnp.int32(W)).reshape(1, HW)

    # Lane-dense layout: spatial axis fills the 128-wide lane dimension.
    x2 = x.reshape(B, C, HW)

    # Per-image VMEM footprint: double-buffered in + out blocks plus ~24 f32
    # (HW,) planes of in-kernel temporaries (pooled planes, 14 column-shifted
    # planes, accumulator, masks, slack).
    per_image_vmem = 4 * C * HW * itemsize + 24 * HW * 4
    sublane = 8 if itemsize >= 4 else 8 * (4 // itemsize)
    budget = _vmem_block_budget()
    TB = _choose_batch_tile(B, per_image_vmem, budget, sublane)
    grid = (B // TB,)

    use_xlu_roll = (HW % 128 == 0)
    kernel = functools.partial(spatial_gate_kernel, H=H, W=W,
                               use_xlu_roll=use_xlu_roll)

    vmem_limit = int(max(32 * 1024 * 1024,
                         min(TB * per_image_vmem + 8 * 1024 * 1024,
                             100 * 1024 * 1024)))

    cost = pl.CostEstimate(
        flops=int((5 * KSIZE * KSIZE) * B * HW + 2 * B * C * HW),
        transcendentals=int(B * HW),
        bytes_accessed=int(2 * B * C * HW * itemsize + 4 * HW))

    out2 = pl.pallas_call(
        kernel,
        out_shape=jax.ShapeDtypeStruct((B, C, HW), x.dtype),
        grid=grid,
        in_specs=[
            pl.BlockSpec(memory_space=pltpu.SMEM),               # params (99,)
            pl.BlockSpec((1, HW), lambda i: (0, 0)),             # col_idx
            pl.BlockSpec((TB, C, HW), lambda i: (i, 0, 0)),      # x block
        ],
        out_specs=pl.BlockSpec((TB, C, HW), lambda i: (i, 0, 0)),
        compiler_params=pltpu.CompilerParams(
            dimension_semantics=("parallel",),
            vmem_limit_bytes=vmem_limit),
        cost_estimate=cost,
        # Footprint win when the caller donates x.  Off by default so callers
        # that keep using x (like the test below) stay safe.
        input_output_aliases=({2: 0} if in_place else {}),
    )(params, col_idx, x2)
    return out2.reshape(B, C, H, W)


def spatial_gate_reference(x, conv_w, bn_gamma, bn_beta, bn_mean, bn_var,
                           eps=1e-5):
    """Pure-JAX reference (mirrors the PyTorch forward in eval mode)."""
    max_pool = jnp.max(x, axis=1, keepdims=True)
    mean_pool = jnp.mean(x, axis=1, keepdims=True)
    pooled = jnp.concatenate([max_pool, mean_pool], axis=1)        # (B,2,H,W)
    y = jax.lax.conv_general_dilated(
        pooled, conv_w, window_strides=(1, 1),
        padding=((PAD, PAD), (PAD, PAD)),
        dimension_numbers=("NCHW", "OIHW", "NCHW"))                # (B,1,H,W)
    y = bn_gamma.reshape(1, 1, 1, 1) * (y - bn_mean.reshape(1, 1, 1, 1)) \
        / jnp.sqrt(bn_var.reshape(1, 1, 1, 1) + eps) \
        + bn_beta.reshape(1, 1, 1, 1)
    scale = jax.nn.sigmoid(y)
    return x * scale


def _run_check(key, B, C, H, W, conv_w, bn_gamma, bn_beta, bn_mean, bn_var):
    x = jax.random.normal(key, (B, C, H, W), dtype=jnp.float32)
    out = jax.block_until_ready(
        spatial_gate(x, conv_w, bn_gamma, bn_beta, bn_mean, bn_var))
    ref = jax.block_until_ready(
        spatial_gate_reference(x, conv_w, bn_gamma, bn_beta, bn_mean, bn_var))
    assert out.shape == (B, C, H, W)
    err = jnp.max(jnp.abs(out - ref))
    assert jnp.allclose(out, ref, rtol=1e-4, atol=1e-5), f"max abs err = {err}"


if __name__ == "__main__":
    key = jax.random.PRNGKey(0)
    k_x1, k_x2, k_w, k_g, k_b, k_m, k_v = jax.random.split(key, 7)

    # Deterministic parameter init (shapes per SpatialGate.__init__):
    #   Conv2d(2, 1, kernel_size=7, bias=False) -> weight (1, 2, 7, 7)
    #   BatchNorm2d(1)                          -> gamma/beta/mean/var (1,)
    fan_in = 2 * KSIZE * KSIZE
    conv_w = jax.random.normal(k_w, (1, 2, KSIZE, KSIZE), dtype=jnp.float32)
    conv_w = conv_w * (1.0 / jnp.sqrt(fan_in))
    bn_gamma = 1.0 + 0.1 * jax.random.normal(k_g, (1,), dtype=jnp.float32)
    bn_beta = 0.05 * jax.random.normal(k_b, (1,), dtype=jnp.float32)
    bn_mean = 0.1 * jax.random.normal(k_m, (1,), dtype=jnp.float32)
    bn_var = 1.0 + 0.2 * jnp.abs(jax.random.normal(k_v, (1,), dtype=jnp.float32))

    # Small demo shape; H*W = 256 is lane-aligned -> XLU roll path.
    _run_check(k_x1, 2, 4, 16, 16, conv_w, bn_gamma, bn_beta, bn_mean, bn_var)
    # Larger, lane-unaligned spatial size (H*W = 784) -> concat fallback path.
    _run_check(k_x2, 2, 32, 28, 28, conv_w, bn_gamma, bn_beta, bn_mean, bn_var)

    print("KERNEL_OK")
</pallas_src>

<mosaic_0001>
module attributes {stable_mosaic.version = 11 : i64} {
  func.func @spatial_gate_kernel(%arg0: i32, %arg1: memref<99xf32, #tpu.memory_space<smem>>, %arg2: memref<1x256xi32, #tpu.memory_space<vmem>>, %arg3: memref<2x4x256xf32, #tpu.memory_space<vmem>>, %arg4: memref<2x4x256xf32, #tpu.memory_space<vmem>>) attributes {dimension_semantics = [#tpu.dimension_semantics<parallel>], iteration_bounds = array<i64: 1>, scalar_prefetch = 0 : i64, scratch_operands = 0 : i64, tpu.core_type = #tpu.core_type<tc>, window_params = [{transform_indices = @transform_0, window_bounds = array<i64: 99>}, {pipeline_mode = #tpu.pipeline_mode<synchronous>, transform_indices = @transform_1, window_bounds = array<i64: 1, 256>}, {transform_indices = @transform_2, window_bounds = array<i64: 2, 4, 256>}, {transform_indices = @transform_3, window_bounds = array<i64: 2, 4, 256>}]} {
    %c0 = arith.constant 0 : index
    %c0_0 = arith.constant 0 : index
    %c0_1 = arith.constant 0 : index
    %0 = vector.load %arg3[%c0, %c0_0, %c0_1] : memref<2x4x256xf32, #tpu.memory_space<vmem>>, vector<2x4x256xf32>
    %cst = arith.constant dense<0xFF800000> : vector<2x256xf32>
    %1 = vector.multi_reduction <maximumf>, %0, %cst [1] : vector<2x4x256xf32> to vector<2x256xf32>
    %cst_2 = arith.constant dense<0.000000e+00> : vector<2x256xf32>
    %2 = vector.multi_reduction <add>, %0, %cst_2 [1] : vector<2x4x256xf32> to vector<2x256xf32>
    %cst_3 = arith.constant 4.000000e+00 : f32
    %3 = vector.broadcast %cst_3 : f32 to vector<2x256xf32>
    %4 = arith.divf %2, %3 : vector<2x256xf32>
    %c0_4 = arith.constant 0 : index
    %c0_5 = arith.constant 0 : index
    %5 = vector.load %arg2[%c0_4, %c0_5] : memref<1x256xi32, #tpu.memory_space<vmem>>, vector<1x256xi32>
    %6 = tpu.iota {dimensions = array<i32: 1>} : vector<1x256xi32>
    %c3_i32 = arith.constant 3 : i32
    %7 = tpu.dynamic_rotate %1 by %c3_i32 dim 1 : vector<2x256xf32>, i32 -> vector<2x256xf32>
    %c3_i32_6 = arith.constant 3 : i32
    %8 = tpu.dynamic_rotate %4 by %c3_i32_6 dim 1 : vector<2x256xf32>, i32 -> vector<2x256xf32>
    %c3_i32_7 = arith.constant 3 : i32
    %9 = vector.broadcast %c3_i32_7 : i32 to vector<1x256xi32>
    %10 = arith.cmpi sge, %5, %9 : vector<1x256xi32>
    %c16_i32 = arith.constant 16 : i32
    %11 = vector.broadcast %c16_i32 : i32 to vector<1x256xi32>
    %12 = arith.cmpi slt, %5, %11 : vector<1x256xi32>
    %13 = arith.andi %10, %12 : vector<1x256xi1>
    %14 = arith.extui %13 : vector<1x256xi1> to vector<1x256xi32>
    %15 = arith.sitofp %14 : vector<1x256xi32> to vector<1x256xf32>
    %16 = vector.broadcast %15 : vector<1x256xf32> to vector<2x256xf32>
    %17 = arith.mulf %7, %16 : vector<2x256xf32>
    %18 = vector.broadcast %15 : vector<1x256xf32> to vector<2x256xf32>
    %19 = arith.mulf %8, %18 : vector<2x256xf32>
    %c2_i32 = arith.constant 2 : i32
    %20 = tpu.dynamic_rotate %1 by %c2_i32 dim 1 : vector<2x256xf32>, i32 -> vector<2x256xf32>
    %c2_i32_8 = arith.constant 2 : i32
    %21 = tpu.dynamic_rotate %4 by %c2_i32_8 dim 1 : vector<2x256xf32>, i32 -> vector<2x256xf32>
    %c2_i32_9 = arith.constant 2 : i32
    %22 = vector.broadcast %c2_i32_9 : i32 to vector<1x256xi32>
    %23 = arith.cmpi sge, %5, %22 : vector<1x256xi32>
    %c16_i32_10 = arith.constant 16 : i32
    %24 = vector.broadcast %c16_i32_10 : i32 to vector<1x256xi32>
    %25 = arith.cmpi slt, %5, %24 : vector<1x256xi32>
    %26 = arith.andi %23, %25 : vector<1x256xi1>
    %27 = arith.extui %26 : vector<1x256xi1> to vector<1x256xi32>
    %28 = arith.sitofp %27 : vector<1x256xi32> to vector<1x256xf32>
    %29 = vector.broadcast %28 : vector<1x256xf32> to vector<2x256xf32>
    %30 = arith.mulf %20, %29 : vector<2x256xf32>
    %31 = vector.broadcast %28 : vector<1x256xf32> to vector<2x256xf32>
    %32 = arith.mulf %21, %31 : vector<2x256xf32>
    %c1_i32 = arith.constant 1 : i32
    %33 = tpu.dynamic_rotate %1 by %c1_i32 dim 1 : vector<2x256xf32>, i32 -> vector<2x256xf32>
    %c1_i32_11 = arith.constant 1 : i32
    %34 = tpu.dynamic_rotate %4 by %c1_i32_11 dim 1 : vector<2x256xf32>, i32 -> vector<2x256xf32>
    %c1_i32_12 = arith.constant 1 : i32
    %35 = vector.broadcast %c1_i32_12 : i32 to vector<1x256xi32>
    %36 = arith.cmpi sge, %5, %35 : vector<1x256xi32>
    %c16_i32_13 = arith.constant 16 : i32
    %37 = vector.broadcast %c16_i32_13 : i32 to vector<1x256xi32>
    %38 = arith.cmpi slt, %5, %37 : vector<1x256xi32>
    %39 = arith.andi %36, %38 : vector<1x256xi1>
    %40 = arith.extui %39 : vector<1x256xi1> to vector<1x256xi32>
    %41 = arith.sitofp %40 : vector<1x256xi32> to vector<1x256xf32>
    %42 = vector.broadcast %41 : vector<1x256xf32> to vector<2x256xf32>
    %43 = arith.mulf %33, %42 : vector<2x256xf32>
    %44 = vector.broadcast %41 : vector<1x256xf32> to vector<2x256xf32>
    %45 = arith.mulf %34, %44 : vector<2x256xf32>
    %c255_i32 = arith.constant 255 : i32
    %46 = tpu.dynamic_rotate %1 by %c255_i32 dim 1 : vector<2x256xf32>, i32 -> vector<2x256xf32>
    %c255_i32_14 = arith.constant 255 : i32
    %47 = tpu.dynamic_rotate %4 by %c255_i32_14 dim 1 : vector<2x256xf32>, i32 -> vector<2x256xf32>
    %c0_i32 = arith.constant 0 : i32
    %48 = vector.broadcast %c0_i32 : i32 to vector<1x256xi32>
    %49 = arith.cmpi sge, %5, %48 : vector<1x256xi32>
    %c15_i32 = arith.constant 15 : i32
    %50 = vector.broadcast %c15_i32 : i32 to vector<1x256xi32>
    %51 = arith.cmpi slt, %5, %50 : vector<1x256xi32>
    %52 = arith.andi %49, %51 : vector<1x256xi1>
    %53 = arith.extui %52 : vector<1x256xi1> to vector<1x256xi32>
    %54 = arith.sitofp %53 : vector<1x256xi32> to vector<1x256xf32>
    %55 = vector.broadcast %54 : vector<1x256xf32> to vector<2x256xf32>
    %56 = arith.mulf %46, %55 : vector<2x256xf32>
    %57 = vector.broadcast %54 : vector<1x256xf32> to vector<2x256xf32>
    %58 = arith.mulf %47, %57 : vector<2x256xf32>
    %c254_i32 = arith.constant 254 : i32
    %59 = tpu.dynamic_rotate %1 by %c254_i32 dim 1 : vector<2x256xf32>, i32 -> vector<2x256xf32>
    %c254_i32_15 = arith.constant 254 : i32
    %60 = tpu.dynamic_rotate %4 by %c254_i32_15 dim 1 : vector<2x256xf32>, i32 -> vector<2x256xf32>
    %c0_i32_16 = arith.constant 0 : i32
    %61 = vector.broadcast %c0_i32_16 : i32 to vector<1x256xi32>
    %62 = arith.cmpi sge, %5, %61 : vector<1x256xi32>
    %c14_i32 = arith.constant 14 : i32
    %63 = vector.broadcast %c14_i32 : i32 to vector<1x256xi32>
    %64 = arith.cmpi slt, %5, %63 : vector<1x256xi32>
    %65 = arith.andi %62, %64 : vector<1x256xi1>
    %66 = arith.extui %65 : vector<1x256xi1> to vector<1x256xi32>
    %67 = arith.sitofp %66 : vector<1x256xi32> to vector<1x256xf32>
    %68 = vector.broadcast %67 : vector<1x256xf32> to vector<2x256xf32>
    %69 = arith.mulf %59, %68 : vector<2x256xf32>
    %70 = vector.broadcast %67 : vector<1x256xf32> to vector<2x256xf32>
    %71 = arith.mulf %60, %70 : vector<2x256xf32>
    %c253_i32 = arith.constant 253 : i32
    %72 = tpu.dynamic_rotate %1 by %c253_i32 dim 1 : vector<2x256xf32>, i32 -> vector<2x256xf32>
    %c253_i32_17 = arith.constant 253 : i32
    %73 = tpu.dynamic_rotate %4 by %c253_i32_17 dim 1 : vector<2x256xf32>, i32 -> vector<2x256xf32>
    %c0_i32_18 = arith.constant 0 : i32
    %74 = vector.broadcast %c0_i32_18 : i32 to vector<1x256xi32>
    %75 = arith.cmpi sge, %5, %74 : vector<1x256xi32>
    %c13_i32 = arith.constant 13 : i32
    %76 = vector.broadcast %c13_i32 : i32 to vector<1x256xi32>
    %77 = arith.cmpi slt, %5, %76 : vector<1x256xi32>
    %78 = arith.andi %75, %77 : vector<1x256xi1>
    %79 = arith.extui %78 : vector<1x256xi1> to vector<1x256xi32>
    %80 = arith.sitofp %79 : vector<1x256xi32> to vector<1x256xf32>
    %81 = vector.broadcast %80 : vector<1x256xf32> to vector<2x256xf32>
    %82 = arith.mulf %72, %81 : vector<2x256xf32>
    %83 = vector.broadcast %80 : vector<1x256xf32> to vector<2x256xf32>
    %84 = arith.mulf %73, %83 : vector<2x256xf32>
    %c0_19 = arith.constant 0 : index
    %85 = memref.load %arg1[%c0_19] : memref<99xf32, #tpu.memory_space<smem>>
    %c49 = arith.constant 49 : index
    %86 = memref.load %arg1[%c49] : memref<99xf32, #tpu.memory_space<smem>>
    %87 = vector.broadcast %85 : f32 to vector<2x256xf32>
    %88 = arith.mulf %87, %17 : vector<2x256xf32>
    %89 = vector.broadcast %86 : f32 to vector<2x256xf32>
    %90 = arith.mulf %89, %19 : vector<2x256xf32>
    %91 = arith.addf %88, %90 : vector<2x256xf32>
    %c1 = arith.constant 1 : index
    %92 = memref.load %arg1[%c1] : memref<99xf32, #tpu.memory_space<smem>>
    %c50 = arith.constant 50 : index
    %93 = memref.load %arg1[%c50] : memref<99xf32, #tpu.memory_space<smem>>
    %94 = vector.broadcast %92 : f32 to vector<2x256xf32>
    %95 = arith.mulf %94, %30 : vector<2x256xf32>
    %96 = vector.broadcast %93 : f32 to vector<2x256xf32>
    %97 = arith.mulf %96, %32 : vector<2x256xf32>
    %98 = arith.addf %95, %97 : vector<2x256xf32>
    %99 = arith.addf %91, %98 : vector<2x256xf32>
    %c2 = arith.constant 2 : index
    %100 = memref.load %arg1[%c2] : memref<99xf32, #tpu.memory_space<smem>>
    %c51 = arith.constant 51 : index
    %101 = memref.load %arg1[%c51] : memref<99xf32, #tpu.memory_space<smem>>
    %102 = vector.broadcast %100 : f32 to vector<2x256xf32>
    %103 = arith.mulf %102, %43 : vector<2x256xf32>
    %104 = vector.broadcast %101 : f32 to vector<2x256xf32>
    %105 = arith.mulf %104, %45 : vector<2x256xf32>
    %106 = arith.addf %103, %105 : vector<2x256xf32>
    %107 = arith.addf %99, %106 : vector<2x256xf32>
    %c3 = arith.constant 3 : index
    %108 = memref.load %arg1[%c3] : memref<99xf32, #tpu.memory_space<smem>>
    %c52 = arith.constant 52 : index
    %109 = memref.load %arg1[%c52] : memref<99xf32, #tpu.memory_space<smem>>
    %110 = vector.broadcast %108 : f32 to vector<2x256xf32>
    %111 = arith.mulf %110, %1 : vector<2x256xf32>
    %112 = vector.broadcast %109 : f32 to vector<2x256xf32>
    %113 = arith.mulf %112, %4 : vector<2x256xf32>
    %114 = arith.addf %111, %113 : vector<2x256xf32>
    %115 = arith.addf %107, %114 : vector<2x256xf32>
    %c4 = arith.constant 4 : index
    %116 = memref.load %arg1[%c4] : memref<99xf32, #tpu.memory_space<smem>>
    %c53 = arith.constant 53 : index
    %117 = memref.load %arg1[%c53] : memref<99xf32, #tpu.memory_space<smem>>
    %118 = vector.broadcast %116 : f32 to vector<2x256xf32>
    %119 = arith.mulf %118, %56 : vector<2x256xf32>
    %120 = vector.broadcast %117 : f32 to vector<2x256xf32>
    %121 = arith.mulf %120, %58 : vector<2x256xf32>
    %122 = arith.addf %119, %121 : vector<2x256xf32>
    %123 = arith.addf %115, %122 : vector<2x256xf32>
    %c5 = arith.constant 5 : index
    %124 = memref.load %arg1[%c5] : memref<99xf32, #tpu.memory_space<smem>>
    %c54 = arith.constant 54 : index
    %125 = memref.load %arg1[%c54] : memref<99xf32, #tpu.memory_space<smem>>
    %126 = vector.broadcast %124 : f32 to vector<2x256xf32>
    %127 = arith.mulf %126, %69 : vector<2x256xf32>
    %128 = vector.broadcast %125 : f32 to vector<2x256xf32>
    %129 = arith.mulf %128, %71 : vector<2x256xf32>
    %130 = arith.addf %127, %129 : vector<2x256xf32>
    %131 = arith.addf %123, %130 : vector<2x256xf32>
    %c6 = arith.constant 6 : index
    %132 = memref.load %arg1[%c6] : memref<99xf32, #tpu.memory_space<smem>>
    %c55 = arith.constant 55 : index
    %133 = memref.load %arg1[%c55] : memref<99xf32, #tpu.memory_space<smem>>
    %134 = vector.broadcast %132 : f32 to vector<2x256xf32>
    %135 = arith.mulf %134, %82 : vector<2x256xf32>
    %136 = vector.broadcast %133 : f32 to vector<2x256xf32>
    %137 = arith.mulf %136, %84 : vector<2x256xf32>
    %138 = arith.addf %135, %137 : vector<2x256xf32>
    %139 = arith.addf %131, %138 : vector<2x256xf32>
    %c48_i32 = arith.constant 48 : i32
    %140 = tpu.dynamic_rotate %139 by %c48_i32 dim 1 : vector<2x256xf32>, i32 -> vector<2x256xf32>
    %c48_i32_20 = arith.constant 48 : i32
    %141 = vector.broadcast %c48_i32_20 : i32 to vector<1x256xi32>
    %142 = arith.cmpi sge, %6, %141 : vector<1x256xi32>
    %c256_i32 = arith.constant 256 : i32
    %143 = vector.broadcast %c256_i32 : i32 to vector<1x256xi32>
    %144 = arith.cmpi slt, %6, %143 : vector<1x256xi32>
    %145 = arith.andi %142, %144 : vector<1x256xi1>
    %146 = arith.extui %145 : vector<1x256xi1> to vector<1x256xi32>
    %147 = arith.sitofp %146 : vector<1x256xi32> to vector<1x256xf32>
    %148 = vector.broadcast %147 : vector<1x256xf32> to vector<2x256xf32>
    %149 = arith.mulf %140, %148 : vector<2x256xf32>
    %c7 = arith.constant 7 : index
    %150 = memref.load %arg1[%c7] : memref<99xf32, #tpu.memory_space<smem>>
    %c56 = arith.constant 56 : index
    %151 = memref.load %arg1[%c56] : memref<99xf32, #tpu.memory_space<smem>>
    %152 = vector.broadcast %150 : f32 to vector<2x256xf32>
    %153 = arith.mulf %152, %17 : vector<2x256xf32>
    %154 = vector.broadcast %151 : f32 to vector<2x256xf32>
    %155 = arith.mulf %154, %19 : vector<2x256xf32>
    %156 = arith.addf %153, %155 : vector<2x256xf32>
    %c8 = arith.constant 8 : index
    %157 = memref.load %arg1[%c8] : memref<99xf32, #tpu.memory_space<smem>>
    %c57 = arith.constant 57 : index
    %158 = memref.load %arg1[%c57] : memref<99xf32, #tpu.memory_space<smem>>
    %159 = vector.broadcast %157 : f32 to vector<2x256xf32>
    %160 = arith.mulf %159, %30 : vector<2x256xf32>
    %161 = vector.broadcast %158 : f32 to vector<2x256xf32>
    %162 = arith.mulf %161, %32 : vector<2x256xf32>
    %163 = arith.addf %160, %162 : vector<2x256xf32>
    %164 = arith.addf %156, %163 : vector<2x256xf32>
    %c9 = arith.constant 9 : index
    %165 = memref.load %arg1[%c9] : memref<99xf32, #tpu.memory_space<smem>>
    %c58 = arith.constant 58 : index
    %166 = memref.load %arg1[%c58] : memref<99xf32, #tpu.memory_space<smem>>
    %167 = vector.broadcast %165 : f32 to vector<2x256xf32>
    %168 = arith.mulf %167, %43 : vector<2x256xf32>
    %169 = vector.broadcast %166 : f32 to vector<2x256xf32>
    %170 = arith.mulf %169, %45 : vector<2x256xf32>
    %171 = arith.addf %168, %170 : vector<2x256xf32>
    %172 = arith.addf %164, %171 : vector<2x256xf32>
    %c10 = arith.constant 10 : index
    %173 = memref.load %arg1[%c10] : memref<99xf32, #tpu.memory_space<smem>>
    %c59 = arith.constant 59 : index
    %174 = memref.load %arg1[%c59] : memref<99xf32, #tpu.memory_space<smem>>
    %175 = vector.broadcast %173 : f32 to vector<2x256xf32>
    %176 = arith.mulf %175, %1 : vector<2x256xf32>
    %177 = vector.broadcast %174 : f32 to vector<2x256xf32>
    %178 = arith.mulf %177, %4 : vector<2x256xf32>
    %179 = arith.addf %176, %178 : vector<2x256xf32>
    %180 = arith.addf %172, %179 : vector<2x256xf32>
    %c11 = arith.constant 11 : index
    %181 = memref.load %arg1[%c11] : memref<99xf32, #tpu.memory_space<smem>>
    %c60 = arith.constant 60 : index
    %182 = memref.load %arg1[%c60] : memref<99xf32, #tpu.memory_space<smem>>
    %183 = vector.broadcast %181 : f32 to vector<2x256xf32>
    %184 = arith.mulf %183, %56 : vector<2x256xf32>
    %185 = vector.broadcast %182 : f32 to vector<2x256xf32>
    %186 = arith.mulf %185, %58 : vector<2x256xf32>
    %187 = arith.addf %184, %186 : vector<2x256xf32>
    %188 = arith.addf %180, %187 : vector<2x256xf32>
    %c12 = arith.constant 12 : index
    %189 = memref.load %arg1[%c12] : memref<99xf32, #tpu.memory_space<smem>>
    %c61 = arith.constant 61 : index
    %190 = memref.load %arg1[%c61] : memref<99xf32, #tpu.memory_space<smem>>
    %191 = vector.broadcast %189 : f32 to vector<2x256xf32>
    %192 = arith.mulf %191, %69 : vector<2x256xf32>
    %193 = vector.broadcast %190 : f32 to vector<2x256xf32>
    %194 = arith.mulf %193, %71 : vector<2x256xf32>
    %195 = arith.addf %192, %194 : vector<2x256xf32>
    %196 = arith.addf %188, %195 : vector<2x256xf32>
    %c13 = arith.constant 13 : index
    %197 = memref.load %arg1[%c13] : memref<99xf32, #tpu.memory_space<smem>>
    %c62 = arith.constant 62 : index
    %198 = memref.load %arg1[%c62] : memref<99xf32, #tpu.memory_space<smem>>
    %199 = vector.broadcast %197 : f32 to vector<2x256xf32>
    %200 = arith.mulf %199, %82 : vector<2x256xf32>
    %201 = vector.broadcast %198 : f32 to vector<2x256xf32>
    %202 = arith.mulf %201, %84 : vector<2x256xf32>
    %203 = arith.addf %200, %202 : vector<2x256xf32>
    %204 = arith.addf %196, %203 : vector<2x256xf32>
    %c32_i32 = arith.constant 32 : i32
    %205 = tpu.dynamic_rotate %204 by %c32_i32 dim 1 : vector<2x256xf32>, i32 -> vector<2x256xf32>
    %c32_i32_21 = arith.constant 32 : i32
    %206 = vector.broadcast %c32_i32_21 : i32 to vector<1x256xi32>
    %207 = arith.cmpi sge, %6, %206 : vector<1x256xi32>
    %c256_i32_22 = arith.constant 256 : i32
    %208 = vector.broadcast %c256_i32_22 : i32 to vector<1x256xi32>
    %209 = arith.cmpi slt, %6, %208 : vector<1x256xi32>
    %210 = arith.andi %207, %209 : vector<1x256xi1>
    %211 = arith.extui %210 : vector<1x256xi1> to vector<1x256xi32>
    %212 = arith.sitofp %211 : vector<1x256xi32> to vector<1x256xf32>
    %213 = vector.broadcast %212 : vector<1x256xf32> to vector<2x256xf32>
    %214 = arith.mulf %205, %213 : vector<2x256xf32>
    %215 = arith.addf %149, %214 : vector<2x256xf32>
    %c14 = arith.constant 14 : index
    %216 = memref.load %arg1[%c14] : memref<99xf32, #tpu.memory_space<smem>>
    %c63 = arith.constant 63 : index
    %217 = memref.load %arg1[%c63] : memref<99xf32, #tpu.memory_space<smem>>
    %218 = vector.broadcast %216 : f32 to vector<2x256xf32>
    %219 = arith.mulf %218, %17 : vector<2x256xf32>
    %220 = vector.broadcast %217 : f32 to vector<2x256xf32>
    %221 = arith.mulf %220, %19 : vector<2x256xf32>
    %222 = arith.addf %219, %221 : vector<2x256xf32>
    %c15 = arith.constant 15 : index
    %223 = memref.load %arg1[%c15] : memref<99xf32, #tpu.memory_space<smem>>
    %c64 = arith.constant 64 : index
    %224 = memref.load %arg1[%c64] : memref<99xf32, #tpu.memory_space<smem>>
    %225 = vector.broadcast %223 : f32 to vector<2x256xf32>
    %226 = arith.mulf %225, %30 : vector<2x256xf32>
    %227 = vector.broadcast %224 : f32 to vector<2x256xf32>
    %228 = arith.mulf %227, %32 : vector<2x256xf32>
    %229 = arith.addf %226, %228 : vector<2x256xf32>
    %230 = arith.addf %222, %229 : vector<2x256xf32>
    %c16 = arith.constant 16 : index
    %231 = memref.load %arg1[%c16] : memref<99xf32, #tpu.memory_space<smem>>
    %c65 = arith.constant 65 : index
    %232 = memref.load %arg1[%c65] : memref<99xf32, #tpu.memory_space<smem>>
    %233 = vector.broadcast %231 : f32 to vector<2x256xf32>
    %234 = arith.mulf %233, %43 : vector<2x256xf32>
    %235 = vector.broadcast %232 : f32 to vector<2x256xf32>
    %236 = arith.mulf %235, %45 : vector<2x256xf32>
    %237 = arith.addf %234, %236 : vector<2x256xf32>
    %238 = arith.addf %230, %237 : vector<2x256xf32>
    %c17 = arith.constant 17 : index
    %239 = memref.load %arg1[%c17] : memref<99xf32, #tpu.memory_space<smem>>
    %c66 = arith.constant 66 : index
    %240 = memref.load %arg1[%c66] : memref<99xf32, #tpu.memory_space<smem>>
    %241 = vector.broadcast %239 : f32 to vector<2x256xf32>
    %242 = arith.mulf %241, %1 : vector<2x256xf32>
    %243 = vector.broadcast %240 : f32 to vector<2x256xf32>
    %244 = arith.mulf %243, %4 : vector<2x256xf32>
    %245 = arith.addf %242, %244 : vector<2x256xf32>
    %246 = arith.addf %238, %245 : vector<2x256xf32>
    %c18 = arith.constant 18 : index
    %247 = memref.load %arg1[%c18] : memref<99xf32, #tpu.memory_space<smem>>
    %c67 = arith.constant 67 : index
    %248 = memref.load %arg1[%c67] : memref<99xf32, #tpu.memory_space<smem>>
    %249 = vector.broadcast %247 : f32 to vector<2x256xf32>
    %250 = arith.mulf %249, %56 : vector<2x256xf32>
    %251 = vector.broadcast %248 : f32 to vector<2x256xf32>
    %252 = arith.mulf %251, %58 : vector<2x256xf32>
    %253 = arith.addf %250, %252 : vector<2x256xf32>
    %254 = arith.addf %246, %253 : vector<2x256xf32>
    %c19 = arith.constant 19 : index
    %255 = memref.load %arg1[%c19] : memref<99xf32, #tpu.memory_space<smem>>
    %c68 = arith.constant 68 : index
    %256 = memref.load %arg1[%c68] : memref<99xf32, #tpu.memory_space<smem>>
    %257 = vector.broadcast %255 : f32 to vector<2x256xf32>
    %258 = arith.mulf %257, %69 : vector<2x256xf32>
    %259 = vector.broadcast %256 : f32 to vector<2x256xf32>
    %260 = arith.mulf %259, %71 : vector<2x256xf32>
    %261 = arith.addf %258, %260 : vector<2x256xf32>
    %262 = arith.addf %254, %261 : vector<2x256xf32>
    %c20 = arith.constant 20 : index
    %263 = memref.load %arg1[%c20] : memref<99xf32, #tpu.memory_space<smem>>
    %c69 = arith.constant 69 : index
    %264 = memref.load %arg1[%c69] : memref<99xf32, #tpu.memory_space<smem>>
    %265 = vector.broadcast %263 : f32 to vector<2x256xf32>
    %266 = arith.mulf %265, %82 : vector<2x256xf32>
    %267 = vector.broadcast %264 : f32 to vector<2x256xf32>
    %268 = arith.mulf %267, %84 : vector<2x256xf32>
    %269 = arith.addf %266, %268 : vector<2x256xf32>
    %270 = arith.addf %262, %269 : vector<2x256xf32>
    %c16_i32_23 = arith.constant 16 : i32
    %271 = tpu.dynamic_rotate %270 by %c16_i32_23 dim 1 : vector<2x256xf32>, i32 -> vector<2x256xf32>
    %c16_i32_24 = arith.constant 16 : i32
    %272 = vector.broadcast %c16_i32_24 : i32 to vector<1x256xi32>
    %273 = arith.cmpi sge, %6, %272 : vector<1x256xi32>
    %c256_i32_25 = arith.constant 256 : i32
    %274 = vector.broadcast %c256_i32_25 : i32 to vector<1x256xi32>
    %275 = arith.cmpi slt, %6, %274 : vector<1x256xi32>
    %276 = arith.andi %273, %275 : vector<1x256xi1>
    %277 = arith.extui %276 : vector<1x256xi1> to vector<1x256xi32>
    %278 = arith.sitofp %277 : vector<1x256xi32> to vector<1x256xf32>
    %279 = vector.broadcast %278 : vector<1x256xf32> to vector<2x256xf32>
    %280 = arith.mulf %271, %279 : vector<2x256xf32>
    %281 = arith.addf %215, %280 : vector<2x256xf32>
    %c21 = arith.constant 21 : index
    %282 = memref.load %arg1[%c21] : memref<99xf32, #tpu.memory_space<smem>>
    %c70 = arith.constant 70 : index
    %283 = memref.load %arg1[%c70] : memref<99xf32, #tpu.memory_space<smem>>
    %284 = vector.broadcast %282 : f32 to vector<2x256xf32>
    %285 = arith.mulf %284, %17 : vector<2x256xf32>
    %286 = vector.broadcast %283 : f32 to vector<2x256xf32>
    %287 = arith.mulf %286, %19 : vector<2x256xf32>
    %288 = arith.addf %285, %287 : vector<2x256xf32>
    %c22 = arith.constant 22 : index
    %289 = memref.load %arg1[%c22] : memref<99xf32, #tpu.memory_space<smem>>
    %c71 = arith.constant 71 : index
    %290 = memref.load %arg1[%c71] : memref<99xf32, #tpu.memory_space<smem>>
    %291 = vector.broadcast %289 : f32 to vector<2x256xf32>
    %292 = arith.mulf %291, %30 : vector<2x256xf32>
    %293 = vector.broadcast %290 : f32 to vector<2x256xf32>
    %294 = arith.mulf %293, %32 : vector<2x256xf32>
    %295 = arith.addf %292, %294 : vector<2x256xf32>
    %296 = arith.addf %288, %295 : vector<2x256xf32>
    %c23 = arith.constant 23 : index
    %297 = memref.load %arg1[%c23] : memref<99xf32, #tpu.memory_space<smem>>
    %c72 = arith.constant 72 : index
    %298 = memref.load %arg1[%c72] : memref<99xf32, #tpu.memory_space<smem>>
    %299 = vector.broadcast %297 : f32 to vector<2x256xf32>
    %300 = arith.mulf %299, %43 : vector<2x256xf32>
    %301 = vector.broadcast %298 : f32 to vector<2x256xf32>
    %302 = arith.mulf %301, %45 : vector<2x256xf32>
    %303 = arith.addf %300, %302 : vector<2x256xf32>
    %304 = arith.addf %296, %303 : vector<2x256xf32>
    %c24 = arith.constant 24 : index
    %305 = memref.load %arg1[%c24] : memref<99xf32, #tpu.memory_space<smem>>
    %c73 = arith.constant 73 : index
    %306 = memref.load %arg1[%c73] : memref<99xf32, #tpu.memory_space<smem>>
    %307 = vector.broadcast %305 : f32 to vector<2x256xf32>
    %308 = arith.mulf %307, %1 : vector<2x256xf32>
    %309 = vector.broadcast %306 : f32 to vector<2x256xf32>
    %310 = arith.mulf %309, %4 : vector<2x256xf32>
    %311 = arith.addf %308, %310 : vector<2x256xf32>
    %312 = arith.addf %304, %311 : vector<2x256xf32>
    %c25 = arith.constant 25 : index
    %313 = memref.load %arg1[%c25] : memref<99xf32, #tpu.memory_space<smem>>
    %c74 = arith.constant 74 : index
    %314 = memref.load %arg1[%c74] : memref<99xf32, #tpu.memory_space<smem>>
    %315 = vector.broadcast %313 : f32 to vector<2x256xf32>
    %316 = arith.mulf %315, %56 : vector<2x256xf32>
    %317 = vector.broadcast %314 : f32 to vector<2x256xf32>
    %318 = arith.mulf %317, %58 : vector<2x256xf32>
    %319 = arith.addf %316, %318 : vector<2x256xf32>
    %320 = arith.addf %312, %319 : vector<2x256xf32>
    %c26 = arith.constant 26 : index
    %321 = memref.load %arg1[%c26] : memref<99xf32, #tpu.memory_space<smem>>
    %c75 = arith.constant 75 : index
    %322 = memref.load %arg1[%c75] : memref<99xf32, #tpu.memory_space<smem>>
    %323 = vector.broadcast %321 : f32 to vector<2x256xf32>
    %324 = arith.mulf %323, %69 : vector<2x256xf32>
    %325 = vector.broadcast %322 : f32 to vector<2x256xf32>
    %326 = arith.mulf %325, %71 : vector<2x256xf32>
    %327 = arith.addf %324, %326 : vector<2x256xf32>
    %328 = arith.addf %320, %327 : vector<2x256xf32>
    %c27 = arith.constant 27 : index
    %329 = memref.load %arg1[%c27] : memref<99xf32, #tpu.memory_space<smem>>
    %c76 = arith.constant 76 : index
    %330 = memref.load %arg1[%c76] : memref<99xf32, #tpu.memory_space<smem>>
    %331 = vector.broadcast %329 : f32 to vector<2x256xf32>
    %332 = arith.mulf %331, %82 : vector<2x256xf32>
    %333 = vector.broadcast %330 : f32 to vector<2x256xf32>
    %334 = arith.mulf %333, %84 : vector<2x256xf32>
    %335 = arith.addf %332, %334 : vector<2x256xf32>
    %336 = arith.addf %328, %335 : vector<2x256xf32>
    %337 = arith.addf %281, %336 : vector<2x256xf32>
    %c28 = arith.constant 28 : index
    %338 = memref.load %arg1[%c28] : memref<99xf32, #tpu.memory_space<smem>>
    %c77 = arith.constant 77 : index
    %339 = memref.load %arg1[%c77] : memref<99xf32, #tpu.memory_space<smem>>
    %340 = vector.broadcast %338 : f32 to vector<2x256xf32>
    %341 = arith.mulf %340, %17 : vector<2x256xf32>
    %342 = vector.broadcast %339 : f32 to vector<2x256xf32>
    %343 = arith.mulf %342, %19 : vector<2x256xf32>
    %344 = arith.addf %341, %343 : vector<2x256xf32>
    %c29 = arith.constant 29 : index
    %345 = memref.load %arg1[%c29] : memref<99xf32, #tpu.memory_space<smem>>
    %c78 = arith.constant 78 : index
    %346 = memref.load %arg1[%c78] : memref<99xf32, #tpu.memory_space<smem>>
    %347 = vector.broadcast %345 : f32 to vector<2x256xf32>
    %348 = arith.mulf %347, %30 : vector<2x256xf32>
    %349 = vector.broadcast %346 : f32 to vector<2x256xf32>
    %350 = arith.mulf %349, %32 : vector<2x256xf32>
    %351 = arith.addf %348, %350 : vector<2x256xf32>
    %352 = arith.addf %344, %351 : vector<2x256xf32>
    %c30 = arith.constant 30 : index
    %353 = memref.load %arg1[%c30] : memref<99xf32, #tpu.memory_space<smem>>
    %c79 = arith.constant 79 : index
    %354 = memref.load %arg1[%c79] : memref<99xf32, #tpu.memory_space<smem>>
    %355 = vector.broadcast %353 : f32 to vector<2x256xf32>
    %356 = arith.mulf %355, %43 : vector<2x256xf32>
    %357 = vector.broadcast %354 : f32 to vector<2x256xf32>
    %358 = arith.mulf %357, %45 : vector<2x256xf32>
    %359 = arith.addf %356, %358 : vector<2x256xf32>
    %360 = arith.addf %352, %359 : vector<2x256xf32>
    %c31 = arith.constant 31 : index
    %361 = memref.load %arg1[%c31] : memref<99xf32, #tpu.memory_space<smem>>
    %c80 = arith.constant 80 : index
    %362 = memref.load %arg1[%c80] : memref<99xf32, #tpu.memory_space<smem>>
    %363 = vector.broadcast %361 : f32 to vector<2x256xf32>
    %364 = arith.mulf %363, %1 : vector<2x256xf32>
    %365 = vector.broadcast %362 : f32 to vector<2x256xf32>
    %366 = arith.mulf %365, %4 : vector<2x256xf32>
    %367 = arith.addf %364, %366 : vector<2x256xf32>
    %368 = arith.addf %360, %367 : vector<2x256xf32>
    %c32 = arith.constant 32 : index
    %369 = memref.load %arg1[%c32] : memref<99xf32, #tpu.memory_space<smem>>
    %c81 = arith.constant 81 : index
    %370 = memref.load %arg1[%c81] : memref<99xf32, #tpu.memory_space<smem>>
    %371 = vector.broadcast %369 : f32 to vector<2x256xf32>
    %372 = arith.mulf %371, %56 : vector<2x256xf32>
    %373 = vector.broadcast %370 : f32 to vector<2x256xf32>
    %374 = arith.mulf %373, %58 : vector<2x256xf32>
    %375 = arith.addf %372, %374 : vector<2x256xf32>
    %376 = arith.addf %368, %375 : vector<2x256xf32>
    %c33 = arith.constant 33 : index
    %377 = memref.load %arg1[%c33] : memref<99xf32, #tpu.memory_space<smem>>
    %c82 = arith.constant 82 : index
    %378 = memref.load %arg1[%c82] : memref<99xf32, #tpu.memory_space<smem>>
    %379 = vector.broadcast %377 : f32 to vector<2x256xf32>
    %380 = arith.mulf %379, %69 : vector<2x256xf32>
    %381 = vector.broadcast %378 : f32 to vector<2x256xf32>
    %382 = arith.mulf %381, %71 : vector<2x256xf32>
    %383 = arith.addf %380, %382 : vector<2x256xf32>
    %384 = arith.addf %376, %383 : vector<2x256xf32>
    %c34 = arith.constant 34 : index
    %385 = memref.load %arg1[%c34] : memref<99xf32, #tpu.memory_space<smem>>
    %c83 = arith.constant 83 : index
    %386 = memref.load %arg1[%c83] : memref<99xf32, #tpu.memory_space<smem>>
    %387 = vector.broadcast %385 : f32 to vector<2x256xf32>
    %388 = arith.mulf %387, %82 : vector<2x256xf32>
    %389 = vector.broadcast %386 : f32 to vector<2x256xf32>
    %390 = arith.mulf %389, %84 : vector<2x256xf32>
    %391 = arith.addf %388, %390 : vector<2x256xf32>
    %392 = arith.addf %384, %391 : vector<2x256xf32>
    %c240_i32 = arith.constant 240 : i32
    %393 = tpu.dynamic_rotate %392 by %c240_i32 dim 1 : vector<2x256xf32>, i32 -> vector<2x256xf32>
    %c0_i32_26 = arith.constant 0 : i32
    %394 = vector.broadcast %c0_i32_26 : i32 to vector<1x256xi32>
    %395 = arith.cmpi sge, %6, %394 : vector<1x256xi32>
    %c240_i32_27 = arith.constant 240 : i32
    %396 = vector.broadcast %c240_i32_27 : i32 to vector<1x256xi32>
    %397 = arith.cmpi slt, %6, %396 : vector<1x256xi32>
    %398 = arith.andi %395, %397 : vector<1x256xi1>
    %399 = arith.extui %398 : vector<1x256xi1> to vector<1x256xi32>
    %400 = arith.sitofp %399 : vector<1x256xi32> to vector<1x256xf32>
    %401 = vector.broadcast %400 : vector<1x256xf32> to vector<2x256xf32>
    %402 = arith.mulf %393, %401 : vector<2x256xf32>
    %403 = arith.addf %337, %402 : vector<2x256xf32>
    %c35 = arith.constant 35 : index
    %404 = memref.load %arg1[%c35] : memref<99xf32, #tpu.memory_space<smem>>
    %c84 = arith.constant 84 : index
    %405 = memref.load %arg1[%c84] : memref<99xf32, #tpu.memory_space<smem>>
    %406 = vector.broadcast %404 : f32 to vector<2x256xf32>
    %407 = arith.mulf %406, %17 : vector<2x256xf32>
    %408 = vector.broadcast %405 : f32 to vector<2x256xf32>
    %409 = arith.mulf %408, %19 : vector<2x256xf32>
    %410 = arith.addf %407, %409 : vector<2x256xf32>
    %c36 = arith.constant 36 : index
    %411 = memref.load %arg1[%c36] : memref<99xf32, #tpu.memory_space<smem>>
    %c85 = arith.constant 85 : index
    %412 = memref.load %arg1[%c85] : memref<99xf32, #tpu.memory_space<smem>>
    %413 = vector.broadcast %411 : f32 to vector<2x256xf32>
    %414 = arith.mulf %413, %30 : vector<2x256xf32>
    %415 = vector.broadcast %412 : f32 to vector<2x256xf32>
    %416 = arith.mulf %415, %32 : vector<2x256xf32>
    %417 = arith.addf %414, %416 : vector<2x256xf32>
    %418 = arith.addf %410, %417 : vector<2x256xf32>
    %c37 = arith.constant 37 : index
    %419 = memref.load %arg1[%c37] : memref<99xf32, #tpu.memory_space<smem>>
    %c86 = arith.constant 86 : index
    %420 = memref.load %arg1[%c86] : memref<99xf32, #tpu.memory_space<smem>>
    %421 = vector.broadcast %419 : f32 to vector<2x256xf32>
    %422 = arith.mulf %421, %43 : vector<2x256xf32>
    %423 = vector.broadcast %420 : f32 to vector<2x256xf32>
    %424 = arith.mulf %423, %45 : vector<2x256xf32>
    %425 = arith.addf %422, %424 : vector<2x256xf32>
    %426 = arith.addf %418, %425 : vector<2x256xf32>
    %c38 = arith.constant 38 : index
    %427 = memref.load %arg1[%c38] : memref<99xf32, #tpu.memory_space<smem>>
    %c87 = arith.constant 87 : index
    %428 = memref.load %arg1[%c87] : memref<99xf32, #tpu.memory_space<smem>>
    %429 = vector.broadcast %427 : f32 to vector<2x256xf32>
    %430 = arith.mulf %429, %1 : vector<2x256xf32>
    %431 = vector.broadcast %428 : f32 to vector<2x256xf32>
    %432 = arith.mulf %431, %4 : vector<2x256xf32>
    %433 = arith.addf %430, %432 : vector<2x256xf32>
    %434 = arith.addf %426, %433 : vector<2x256xf32>
    %c39 = arith.constant 39 : index
    %435 = memref.load %arg1[%c39] : memref<99xf32, #tpu.memory_space<smem>>
    %c88 = arith.constant 88 : index
    %436 = memref.load %arg1[%c88] : memref<99xf32, #tpu.memory_space<smem>>
    %437 = vector.broadcast %435 : f32 to vector<2x256xf32>
    %438 = arith.mulf %437, %56 : vector<2x256xf32>
    %439 = vector.broadcast %436 : f32 to vector<2x256xf32>
    %440 = arith.mulf %439, %58 : vector<2x256xf32>
    %441 = arith.addf %438, %440 : vector<2x256xf32>
    %442 = arith.addf %434, %441 : vector<2x256xf32>
    %c40 = arith.constant 40 : index
    %443 = memref.load %arg1[%c40] : memref<99xf32, #tpu.memory_space<smem>>
    %c89 = arith.constant 89 : index
    %444 = memref.load %arg1[%c89] : memref<99xf32, #tpu.memory_space<smem>>
    %445 = vector.broadcast %443 : f32 to vector<2x256xf32>
    %446 = arith.mulf %445, %69 : vector<2x256xf32>
    %447 = vector.broadcast %444 : f32 to vector<2x256xf32>
    %448 = arith.mulf %447, %71 : vector<2x256xf32>
    %449 = arith.addf %446, %448 : vector<2x256xf32>
    %450 = arith.addf %442, %449 : vector<2x256xf32>
    %c41 = arith.constant 41 : index
    %451 = memref.load %arg1[%c41] : memref<99xf32, #tpu.memory_space<smem>>
    %c90 = arith.constant 90 : index
    %452 = memref.load %arg1[%c90] : memref<99xf32, #tpu.memory_space<smem>>
    %453 = vector.broadcast %451 : f32 to vector<2x256xf32>
    %454 = arith.mulf %453, %82 : vector<2x256xf32>
    %455 = vector.broadcast %452 : f32 to vector<2x256xf32>
    %456 = arith.mulf %455, %84 : vector<2x256xf32>
    %457 = arith.addf %454, %456 : vector<2x256xf32>
    %458 = arith.addf %450, %457 : vector<2x256xf32>
    %c224_i32 = arith.constant 224 : i32
    %459 = tpu.dynamic_rotate %458 by %c224_i32 dim 1 : vector<2x256xf32>, i32 -> vector<2x256xf32>
    %c0_i32_28 = arith.constant 0 : i32
    %460 = vector.broadcast %c0_i32_28 : i32 to vector<1x256xi32>
    %461 = arith.cmpi sge, %6, %460 : vector<1x256xi32>
    %c224_i32_29 = arith.constant 224 : i32
    %462 = vector.broadcast %c224_i32_29 : i32 to vector<1x256xi32>
    %463 = arith.cmpi slt, %6, %462 : vector<1x256xi32>
    %464 = arith.andi %461, %463 : vector<1x256xi1>
    %465 = arith.extui %464 : vector<1x256xi1> to vector<1x256xi32>
    %466 = arith.sitofp %465 : vector<1x256xi32> to vector<1x256xf32>
    %467 = vector.broadcast %466 : vector<1x256xf32> to vector<2x256xf32>
    %468 = arith.mulf %459, %467 : vector<2x256xf32>
    %469 = arith.addf %403, %468 : vector<2x256xf32>
    %c42 = arith.constant 42 : index
    %470 = memref.load %arg1[%c42] : memref<99xf32, #tpu.memory_space<smem>>
    %c91 = arith.constant 91 : index
    %471 = memref.load %arg1[%c91] : memref<99xf32, #tpu.memory_space<smem>>
    %472 = vector.broadcast %470 : f32 to vector<2x256xf32>
    %473 = arith.mulf %472, %17 : vector<2x256xf32>
    %474 = vector.broadcast %471 : f32 to vector<2x256xf32>
    %475 = arith.mulf %474, %19 : vector<2x256xf32>
    %476 = arith.addf %473, %475 : vector<2x256xf32>
    %c43 = arith.constant 43 : index
    %477 = memref.load %arg1[%c43] : memref<99xf32, #tpu.memory_space<smem>>
    %c92 = arith.constant 92 : index
    %478 = memref.load %arg1[%c92] : memref<99xf32, #tpu.memory_space<smem>>
    %479 = vector.broadcast %477 : f32 to vector<2x256xf32>
    %480 = arith.mulf %479, %30 : vector<2x256xf32>
    %481 = vector.broadcast %478 : f32 to vector<2x256xf32>
    %482 = arith.mulf %481, %32 : vector<2x256xf32>
    %483 = arith.addf %480, %482 : vector<2x256xf32>
    %484 = arith.addf %476, %483 : vector<2x256xf32>
    %c44 = arith.constant 44 : index
    %485 = memref.load %arg1[%c44] : memref<99xf32, #tpu.memory_space<smem>>
    %c93 = arith.constant 93 : index
    %486 = memref.load %arg1[%c93] : memref<99xf32, #tpu.memory_space<smem>>
    %487 = vector.broadcast %485 : f32 to vector<2x256xf32>
    %488 = arith.mulf %487, %43 : vector<2x256xf32>
    %489 = vector.broadcast %486 : f32 to vector<2x256xf32>
    %490 = arith.mulf %489, %45 : vector<2x256xf32>
    %491 = arith.addf %488, %490 : vector<2x256xf32>
    %492 = arith.addf %484, %491 : vector<2x256xf32>
    %c45 = arith.constant 45 : index
    %493 = memref.load %arg1[%c45] : memref<99xf32, #tpu.memory_space<smem>>
    %c94 = arith.constant 94 : index
    %494 = memref.load %arg1[%c94] : memref<99xf32, #tpu.memory_space<smem>>
    %495 = vector.broadcast %493 : f32 to vector<2x256xf32>
    %496 = arith.mulf %495, %1 : vector<2x256xf32>
    %497 = vector.broadcast %494 : f32 to vector<2x256xf32>
    %498 = arith.mulf %497, %4 : vector<2x256xf32>
    %499 = arith.addf %496, %498 : vector<2x256xf32>
    %500 = arith.addf %492, %499 : vector<2x256xf32>
    %c46 = arith.constant 46 : index
    %501 = memref.load %arg1[%c46] : memref<99xf32, #tpu.memory_space<smem>>
    %c95 = arith.constant 95 : index
    %502 = memref.load %arg1[%c95] : memref<99xf32, #tpu.memory_space<smem>>
    %503 = vector.broadcast %501 : f32 to vector<2x256xf32>
    %504 = arith.mulf %503, %56 : vector<2x256xf32>
    %505 = vector.broadcast %502 : f32 to vector<2x256xf32>
    %506 = arith.mulf %505, %58 : vector<2x256xf32>
    %507 = arith.addf %504, %506 : vector<2x256xf32>
    %508 = arith.addf %500, %507 : vector<2x256xf32>
    %c47 = arith.constant 47 : index
    %509 = memref.load %arg1[%c47] : memref<99xf32, #tpu.memory_space<smem>>
    %c96 = arith.constant 96 : index
    %510 = memref.load %arg1[%c96] : memref<99xf32, #tpu.memory_space<smem>>
    %511 = vector.broadcast %509 : f32 to vector<2x256xf32>
    %512 = arith.mulf %511, %69 : vector<2x256xf32>
    %513 = vector.broadcast %510 : f32 to vector<2x256xf32>
    %514 = arith.mulf %513, %71 : vector<2x256xf32>
    %515 = arith.addf %512, %514 : vector<2x256xf32>
    %516 = arith.addf %508, %515 : vector<2x256xf32>
    %c48 = arith.constant 48 : index
    %517 = memref.load %arg1[%c48] : memref<99xf32, #tpu.memory_space<smem>>
    %c97 = arith.constant 97 : index
    %518 = memref.load %arg1[%c97] : memref<99xf32, #tpu.memory_space<smem>>
    %519 = vector.broadcast %517 : f32 to vector<2x256xf32>
    %520 = arith.mulf %519, %82 : vector<2x256xf32>
    %521 = vector.broadcast %518 : f32 to vector<2x256xf32>
    %522 = arith.mulf %521, %84 : vector<2x256xf32>
    %523 = arith.addf %520, %522 : vector<2x256xf32>
    %524 = arith.addf %516, %523 : vector<2x256xf32>
    %c208_i32 = arith.constant 208 : i32
    %525 = tpu.dynamic_rotate %524 by %c208_i32 dim 1 : vector<2x256xf32>, i32 -> vector<2x256xf32>
    %c0_i32_30 = arith.constant 0 : i32
    %526 = vector.broadcast %c0_i32_30 : i32 to vector<1x256xi32>
    %527 = arith.cmpi sge, %6, %526 : vector<1x256xi32>
    %c208_i32_31 = arith.constant 208 : i32
    %528 = vector.broadcast %c208_i32_31 : i32 to vector<1x256xi32>
    %529 = arith.cmpi slt, %6, %528 : vector<1x256xi32>
    %530 = arith.andi %527, %529 : vector<1x256xi1>
    %531 = arith.extui %530 : vector<1x256xi1> to vector<1x256xi32>
    %532 = arith.sitofp %531 : vector<1x256xi32> to vector<1x256xf32>
    %533 = vector.broadcast %532 : vector<1x256xf32> to vector<2x256xf32>
    %534 = arith.mulf %525, %533 : vector<2x256xf32>
    %535 = arith.addf %469, %534 : vector<2x256xf32>
    %c98 = arith.constant 98 : index
    %536 = memref.load %arg1[%c98] : memref<99xf32, #tpu.memory_space<smem>>
    %537 = vector.broadcast %536 : f32 to vector<2x256xf32>
    %538 = arith.addf %535, %537 : vector<2x256xf32>
    %539 = arith.negf %538 : vector<2x256xf32>
    %540 = math.exp %539 : vector<2x256xf32>
    %cst_32 = arith.constant 1.000000e+00 : f32
    %541 = vector.broadcast %cst_32 : f32 to vector<2x256xf32>
    %542 = arith.addf %541, %540 : vector<2x256xf32>
    %543 = arith.divf %541, %542 : vector<2x256xf32>
    %c0_33 = arith.constant 0 : index
    %c0_34 = arith.constant 0 : index
    %c0_35 = arith.constant 0 : index
    %544 = vector.load %arg3[%c0_33, %c0_34, %c0_35] : memref<2x4x256xf32, #tpu.memory_space<vmem>>, vector<2x4x256xf32>
    %545 = vector.shape_cast %543 : vector<2x256xf32> to vector<2x1x256xf32>
    %546 = vector.broadcast %545 : vector<2x1x256xf32> to vector<2x4x256xf32>
    %547 = arith.mulf %544, %546 : vector<2x4x256xf32>
    %c0_36 = arith.constant 0 : index
    %c0_37 = arith.constant 0 : index
    %c0_38 = arith.constant 0 : index
    %548 = vector.load %arg4[%c0_36, %c0_37, %c0_38] : memref<2x4x256xf32, #tpu.memory_space<vmem>>, vector<2x4x256xf32>
    tpu.vector_store %arg4[%c0_36, %c0_37, %c0_38], %547 {strides = array<i32>} : memref<2x4x256xf32, #tpu.memory_space<vmem>>, vector<2x4x256xf32>,
    return
  }
  func.func @transform_0(%arg0: i32) -> i32 {
    %c0_i32 = arith.constant 0 : i32
    %c0_i32_0 = arith.constant 0 : i32
    return %c0_i32 : i32
  }
  func.func @transform_1(%arg0: i32) -> (i32, i32) {
    %c0_i32 = arith.constant 0 : i32
    %c0_i32_0 = arith.constant 0 : i32
    %c0_i32_1 = arith.constant 0 : i32
    return %c0_i32, %c0_i32_0 : i32, i32
  }
  func.func @transform_2(%arg0: i32) -> (i32, i32, i32) {
    %c0_i32 = arith.constant 0 : i32
    %c0_i32_0 = arith.constant 0 : i32
    %c0_i32_1 = arith.constant 0 : i32
    return %arg0, %c0_i32, %c0_i32_0 : i32, i32, i32
  }
  func.func @transform_3(%arg0: i32) -> (i32, i32, i32) {
    %c0_i32 = arith.constant 0 : i32
    %c0_i32_0 = arith.constant 0 : i32
    %c0_i32_1 = arith.constant 0 : i32
    return %arg0, %c0_i32, %c0_i32_0 : i32, i32, i32
  }
}

</mosaic_0001>

<llo_original>
// kernel: tpu_custom_call.1
$region0: #{tpu_custom_call.1}
  #allocation0 [shape = 'u32[]', space=smem, size = 0x4, offset = 0x4, fixed_abs, tag = 'smem constant byte address 0x4 - core index']
  #allocation1 [shape = 'u32[72,128]{1,0:T(1,128)}', space=vmem, size = 0x9000, scoped, tag = 'internal scratch']
  %s0 = inlined_call_operand.hbm [shape: f32[99], index: 0, kind: input, shape index: {}]
  %s1 = inlined_call_operand.hbm [shape: s32[1,256], index: 1, kind: input, shape index: {}]
  %s2 = inlined_call_operand.hbm [shape: f32[2,4,256], index: 2, kind: input, shape index: {}]
  %s3 = inlined_call_operand.hbm [shape: f32[2,4,256], index: 3, kind: output, shape index: {}]
  %s4 = sld [smem:[#allocation0]]
  $region34: #{tpu_custom_call.1} parent=0
    _
  %s6 = ssub.s32 1, %s4
  %s7 = scalar_select 0, %s6, %s4
  $region1: #{tpu_custom_call.1} parent=0
    #allocation2 [shape = 'u8[512]{0}', space=smem, size = 0x200, scoped, tag = 'input window, operand 0, single buffered']
    #allocation3 [shape = 's32[1]{0}', space=sflag, size = 0x4, scoped, tag = 'scoped memory for tpu_custom_call.1']
    #allocation4 [shape = 's32[1]{0}', space=sflag, size = 0x4, scoped, tag = 'scoped memory for tpu_custom_call.1']
    #allocation5 [shape = 's32[1]{0}', space=sflag, size = 0x4, scoped, tag = 'scoped memory for tpu_custom_call.1']
    #allocation6 [shape = 'u8[1024]{0}', space=vmem, size = 0x400, scoped, tag = 'input window, operand 1, single buffered']
    #allocation7 [shape = 'u8[8192]{0}', space=vmem, size = 0x2000, scoped, tag = 'input window, operand 2, single buffered']
    #allocation8 [shape = 's32[1]{0}', space=sflag, size = 0x4, scoped, tag = 'scoped memory for tpu_custom_call.1']
    #allocation9 [shape = 'u8[8192]{0}', space=vmem, size = 0x2000, scoped, tag = 'output window, operand 0, single buffered']
    %8 = vsyncpa [#allocation5], 0
    %9 = vsyncpa [#allocation3], 0
    %10 = vsyncpa [#allocation8], 0
    %11 = vsyncpa [#allocation4], 0
    // Predicated region
    $region2: #{tpu_custom_call.1} parent=1 // pred_check
      _
    $region3: #{tpu_custom_call.1} parent=1 // pred_check_branch
      %13 = sbr.rel (0) target = $region5
    $region4: #{tpu_custom_call.1} parent=1 // pred_region
      %15 = vsyncadd [#allocation5], 0
      %s17 = sshll.u32 %s0, 4
      %s18 = int_to_ptr.hbm [resolvable:$true] %s17
      %20 = dma.hbm_to_smem %s18, 16, [#allocation2], [#allocation5]
    $region5: #{tpu_custom_call.1} parent=1 // pred_fallthru
      _
    // Predicated region
    $region6: #{tpu_custom_call.1} parent=1 // pred_check
      _
    $region7: #{tpu_custom_call.1} parent=1 // pred_check_branch
      %22 = sbr.rel (0) target = $region9
    $region8: #{tpu_custom_call.1} parent=1 // pred_region
      %24 = vsyncadd [#allocation3], 0
      %s26 = sshll.u32 %s1, 4
      %s27 = int_to_ptr.hbm [resolvable:$true] %s26
      %s28 = sshll.u32 [#allocation6], 4
      %s29 = int_to_ptr.vmem [resolvable:$true] %s28
      %31 = dma.hbm_to_vmem [thread:$0]  %s27, 32, %s29, [#allocation3]
    $region9: #{tpu_custom_call.1} parent=1 // pred_fallthru
      _
    // Predicated region
    $region10: #{tpu_custom_call.1} parent=1 // pred_check
      _
    $region11: #{tpu_custom_call.1} parent=1 // pred_check_branch
      %33 = sbr.rel (0) target = $region13
    $region12: #{tpu_custom_call.1} parent=1 // pred_region
      %35 = vsyncadd [#allocation8], 0
      %s36 = sshll.u32 %s2, 4
      %s37 = int_to_ptr.hbm [resolvable:$true] %s36
      %s38 = sshll.u32 [#allocation7], 4
      %s39 = int_to_ptr.vmem [resolvable:$true] %s38
      %44 = dma.hbm_to_vmem [thread:$0]  %s37, 256, %s39, [#allocation8], 128, 128, 8
    $region13: #{tpu_custom_call.1} parent=1 // pred_fallthru
      _
    // Predicated region
    $region14: #{tpu_custom_call.1} parent=1 // pred_check
      _
    $region15: #{tpu_custom_call.1} parent=1 // pred_check_branch
      %46 = sbr.rel (0) target = $region17
    $region16: #{tpu_custom_call.1} parent=1 // pred_region
      %48 = dma.done [#allocation5], 16
    $region17: #{tpu_custom_call.1} parent=1 // pred_fallthru
      _
    // Predicated region
    $region18: #{tpu_custom_call.1} parent=1 // pred_check
      _
    $region19: #{tpu_custom_call.1} parent=1 // pred_check_branch
      %50 = sbr.rel (0) target = $region21
    $region20: #{tpu_custom_call.1} parent=1 // pred_region
      %52 = dma.done [#allocation3], 32
    $region21: #{tpu_custom_call.1} parent=1 // pred_fallthru
      _
    // Predicated region
    $region22: #{tpu_custom_call.1} parent=1 // pred_check
      _
    $region23: #{tpu_custom_call.1} parent=1 // pred_check_branch
      %54 = sbr.rel (0) target = $region25
    $region24: #{tpu_custom_call.1} parent=1 // pred_region
      %56 = dma.done [#allocation8], 256
    $region25: #{tpu_custom_call.1} parent=1 // pred_fallthru
      _
    %57 = sfence
    %v58 = vld [vmem:[#allocation7] sm:$0xff]
    %v59 = vld [vmem:[#allocation7 + $0x8] sm:$0xff]
    %62 = vst [vmem:[#allocation1] ss:$2 sm:$0xff] %v58
    %v63 = vld.sshfl [vmem:[#allocation1] sm:$0xff pattern:$0x75316420]
    %v64 = vld.sshfl [vmem:[#allocation1 + $0x8] sm:$0xff pattern:$0x75316420]
    %s65 = scalar_lea.vmem [#allocation1], 16
    %66 = vst [vmem:[%s65] ss:$2 sm:$0xff] %v59
    %v67 = vld.sshfl [vmem:[#allocation1 + $0x10] sm:$0xff pattern:$0x75316420]
    %v68 = vld.sshfl [vmem:[#allocation1 + $0x18] sm:$0xff pattern:$0x75316420]
    %vm73 = vcmask 1043456
    %v74 = vsel %vm73, %v63, -inf
    %v75 = vrot.slane %v74, 4
    %v76 = vmax.f32 %v74, %v75
    %v77 = vrot.slane %v76, 2
    %v78 = vmax.f32 %v76, %v77
    %v79 = vrot.slane %v78, 1
    %v80 = vmax.f32 %v78, %v79
    %v81 = vsel %vm73, %v64, -inf
    %v82 = vrot.slane %v81, 4
    %v83 = vmax.f32 %v81, %v82
    %v84 = vrot.slane %v83, 2
    %v85 = vmax.f32 %v83, %v84
    %v86 = vrot.slane %v85, 1
    %v87 = vmax.f32 %v85, %v86
    %v88 = vsel %vm73, %v67, -inf
    %v89 = vrot.slane %v88, 4
    %v90 = vmax.f32 %v88, %v89
    %v91 = vrot.slane %v90, 2
    %v92 = vmax.f32 %v90, %v91
    %v93 = vrot.slane %v92, 1
    %v94 = vmax.f32 %v92, %v93
    %v95 = vsel %vm73, %v68, -inf
    %v96 = vrot.slane %v95, 4
    %v97 = vmax.f32 %v95, %v96
    %v98 = vrot.slane %v97, 2
    %v99 = vmax.f32 %v97, %v98
    %v100 = vrot.slane %v99, 1
    %v101 = vmax.f32 %v99, %v100
    %102 = vst [vmem:[#allocation1] ss:$2 sm:$0xff] %v58
    %v103 = vld.sshfl [vmem:[#allocation1] sm:$0xff pattern:$0x75316420]
    %v104 = vld.sshfl [vmem:[#allocation1 + $0x8] sm:$0xff pattern:$0x75316420]
    %s105 = scalar_lea.vmem [#allocation1], 16
    %106 = vst [vmem:[%s105] ss:$2 sm:$0xff] %v59
    %v107 = vld.sshfl [vmem:[#allocation1 + $0x10] sm:$0xff pattern:$0x75316420]
    %v108 = vld.sshfl [vmem:[#allocation1 + $0x18] sm:$0xff pattern:$0x75316420]
    %v113 = vsel %vm73, %v103, 0.0
    %v114 = vrot.slane %v113, 4
    %v115 = vadd.f32 %v113, %v114
    %v116 = vrot.slane %v115, 2
    %v117 = vadd.f32 %v115, %v116
    %v118 = vrot.slane %v117, 1
    %v119 = vadd.f32 %v117, %v118
    %v120 = vsel %vm73, %v104, 0.0
    %v121 = vrot.slane %v120, 4
    %v122 = vadd.f32 %v120, %v121
    %v123 = vrot.slane %v122, 2
    %v124 = vadd.f32 %v122, %v123
    %v125 = vrot.slane %v124, 1
    %v126 = vadd.f32 %v124, %v125
    %v127 = vsel %vm73, %v107, 0.0
    %v128 = vrot.slane %v127, 4
    %v129 = vadd.f32 %v127, %v128
    %v130 = vrot.slane %v129, 2
    %v131 = vadd.f32 %v129, %v130
    %v132 = vrot.slane %v131, 1
    %v133 = vadd.f32 %v131, %v132
    %v134 = vsel %vm73, %v108, 0.0
    %v135 = vrot.slane %v134, 4
    %v136 = vadd.f32 %v134, %v135
    %v137 = vrot.slane %v136, 2
    %v138 = vadd.f32 %v136, %v137
    %v139 = vrot.slane %v138, 1
    %v140 = vadd.f32 %v138, %v139
    %v141 = vrcp.pop 4.0
    %v142 = vmul.f32 4.0, %v141
    %v143 = vsub.f32 1.0, %v142
    %v144 = vmul.f32 %v141, %v143
    %v145 = vadd.f32 %v141, %v144
    %vm146 = vweird.f32 %v141
    %v147 = vsel %vm146, %v141, %v145
    %v148 = vmul.f32 %v119, %v147
    %v149 = vmul.f32 %v126, %v147
    %v150 = vmul.f32 %v133, %v147
    %v151 = vmul.f32 %v140, %v147
    %v152 = vld [vmem:[#allocation6] sm:$0x3]
    %v153 = vlaneseq
    %v154 = vand.u32 %v153, 127
    %v155 = vadd.s32 %v154, 128
    %vm160 = vcmask 1041409
    %v161 = vsel %vm160, %v94, %v80
    %v162 = vsel %vm160, %v101, %v87
    %165 = vrot.lane.b32.xlu0 %v161, 3
    %v166 = vpop.permute.xlu0 %165
    %167 = vrot.lane.b32.xlu0 %v162, 3
    %v168 = vpop.permute.xlu0 %167
    %vm169 = vcmp.lt.s32.totalorder %v154, 3
    %v170 = vsel %vm169, %v166, %v168
    %v171 = vsel %vm169, %v168, %v166
    %v176 = vsel %vm160, %v150, %v148
    %v177 = vsel %vm160, %v151, %v149
    %180 = vrot.lane.b32.xlu0 %v176, 3
    %v181 = vpop.permute.xlu0 %180
    %182 = vrot.lane.b32.xlu0 %v177, 3
    %v183 = vpop.permute.xlu0 %182
    %v184 = vsel %vm169, %v181, %v183
    %v185 = vsel %vm169, %v183, %v181
    %vm186 = vcmp.ge.s32.totalorder %v152, 3
    %vm187 = vcmp.lt.s32.totalorder %v152, 16
    %vm188 = vmand %vm186, %vm187
    %v189 = vsel %vm188, 1, 0
    %v190 = vcvt.s32.f32 %v189
    %v192 = vperm.slane %v190, 0
    %v193 = vperm.slane %v190, 1
    %v196 = vmul.f32 %v171, %v192
    %v197 = vmul.f32 %v170, %v193
    %v198 = vmul.f32 %v185, %v192
    %v199 = vmul.f32 %v184, %v193
    %200 = vrot.lane.b32.xlu0 %v161, 2
    %v201 = vpop.permute.xlu0 %200
    %202 = vrot.lane.b32.xlu0 %v162, 2
    %v203 = vpop.permute.xlu0 %202
    %vm204 = vcmp.lt.s32.totalorder %v154, 2
    %v205 = vsel %vm204, %v201, %v203
    %v206 = vsel %vm204, %v203, %v201
    %207 = vrot.lane.b32.xlu0 %v176, 2
    %v208 = vpop.permute.xlu0 %207
    %209 = vrot.lane.b32.xlu0 %v177, 2
    %v210 = vpop.permute.xlu0 %209
    %v211 = vsel %vm204, %v208, %v210
    %v212 = vsel %vm204, %v210, %v208
    %vm213 = vcmp.ge.s32.totalorder %v152, 2
    %vm214 = vmand %vm213, %vm187
    %v215 = vsel %vm214, 1, 0
    %v216 = vcvt.s32.f32 %v215
    %v218 = vperm.slane %v216, 0
    %v219 = vperm.slane %v216, 1
    %v222 = vmul.f32 %v206, %v218
    %v223 = vmul.f32 %v205, %v219
    %v224 = vmul.f32 %v212, %v218
    %v225 = vmul.f32 %v211, %v219
    %226 = vrot.lane.b32.xlu0 %v161, 1
    %v227 = vpop.permute.xlu0 %226
    %228 = vrot.lane.b32.xlu0 %v162, 1
    %v229 = vpop.permute.xlu0 %228
    %vm230 = vcmp.lt.s32.totalorder %v154, 1
    %v231 = vsel %vm230, %v227, %v229
    %v232 = vsel %vm230, %v229, %v227
    %233 = vrot.lane.b32.xlu0 %v176, 1
    %v234 = vpop.permute.xlu0 %233
    %235 = vrot.lane.b32.xlu0 %v177, 1
    %v236 = vpop.permute.xlu0 %235
    %v237 = vsel %vm230, %v234, %v236
    %v238 = vsel %vm230, %v236, %v234
    %vm239 = vcmp.ge.s32.totalorder %v152, 1
    %vm240 = vmand %vm239, %vm187
    %v241 = vsel %vm240, 1, 0
    %v242 = vcvt.s32.f32 %v241
    %v244 = vperm.slane %v242, 0
    %v245 = vperm.slane %v242, 1
    %v248 = vmul.f32 %v232, %v244
    %v249 = vmul.f32 %v231, %v245
    %v250 = vmul.f32 %v238, %v244
    %v251 = vmul.f32 %v237, %v245
    %252 = vrot.lane.b32.xlu0 %v161, 127
    %v253 = vpop.permute.xlu0 %252
    %254 = vrot.lane.b32.xlu0 %v162, 127
    %v255 = vpop.permute.xlu0 %254
    %vm256 = vcmp.lt.s32.totalorder %v154, 127
    %v257 = vsel %vm256, %v253, %v255
    %v258 = vsel %vm256, %v255, %v253
    %259 = vrot.lane.b32.xlu0 %v176, 127
    %v260 = vpop.permute.xlu0 %259
    %261 = vrot.lane.b32.xlu0 %v177, 127
    %v262 = vpop.permute.xlu0 %261
    %v263 = vsel %vm256, %v260, %v262
    %v264 = vsel %vm256, %v262, %v260
    %vm265 = vcmp.ge.s32.totalorder %v152, 0
    %vm266 = vcmp.lt.s32.totalorder %v152, 15
    %vm267 = vmand %vm265, %vm266
    %v268 = vsel %vm267, 1, 0
    %v269 = vcvt.s32.f32 %v268
    %v271 = vperm.slane %v269, 0
    %v272 = vperm.slane %v269, 1
    %v275 = vmul.f32 %v257, %v271
    %v276 = vmul.f32 %v258, %v272
    %v277 = vmul.f32 %v263, %v271
    %v278 = vmul.f32 %v264, %v272
    %279 = vrot.lane.b32.xlu0 %v161, 126
    %v280 = vpop.permute.xlu0 %279
    %281 = vrot.lane.b32.xlu0 %v162, 126
    %v282 = vpop.permute.xlu0 %281
    %vm283 = vcmp.lt.s32.totalorder %v154, 126
    %v284 = vsel %vm283, %v280, %v282
    %v285 = vsel %vm283, %v282, %v280
    %286 = vrot.lane.b32.xlu0 %v176, 126
    %v287 = vpop.permute.xlu0 %286
    %288 = vrot.lane.b32.xlu0 %v177, 126
    %v289 = vpop.permute.xlu0 %288
    %v290 = vsel %vm283, %v287, %v289
    %v291 = vsel %vm283, %v289, %v287
    %vm292 = vcmp.lt.s32.totalorder %v152, 14
    %vm293 = vmand %vm265, %vm292
    %v294 = vsel %vm293, 1, 0
    %v295 = vcvt.s32.f32 %v294
    %v297 = vperm.slane %v295, 0
    %v298 = vperm.slane %v295, 1
    %v301 = vmul.f32 %v284, %v297
    %v302 = vmul.f32 %v285, %v298
    %v303 = vmul.f32 %v290, %v297
    %v304 = vmul.f32 %v291, %v298
    %305 = vrot.lane.b32.xlu0 %v161, 125
    %v306 = vpop.permute.xlu0 %305
    %307 = vrot.lane.b32.xlu0 %v162, 125
    %v308 = vpop.permute.xlu0 %307
    %vm309 = vcmp.lt.s32.totalorder %v154, 125
    %v310 = vsel %vm309, %v306, %v308
    %v311 = vsel %vm309, %v308, %v306
    %312 = vrot.lane.b32.xlu0 %v176, 125
    %v313 = vpop.permute.xlu0 %312
    %314 = vrot.lane.b32.xlu0 %v177, 125
    %v315 = vpop.permute.xlu0 %314
    %v316 = vsel %vm309, %v313, %v315
    %v317 = vsel %vm309, %v315, %v313
    %vm318 = vcmp.lt.s32.totalorder %v152, 13
    %vm319 = vmand %vm265, %vm318
    %v320 = vsel %vm319, 1, 0
    %v321 = vcvt.s32.f32 %v320
    %v323 = vperm.slane %v321, 0
    %v324 = vperm.slane %v321, 1
    %v327 = vmul.f32 %v310, %v323
    %v328 = vmul.f32 %v311, %v324
    %v329 = vmul.f32 %v316, %v323
    %v330 = vmul.f32 %v317, %v324
    %s331 = sld [smem:[#allocation2]]
    %s332 = sld [smem:[#allocation2 + $0x31]]
    %v333 = vstv %s331
    %v334 = vmul.f32 %v333, %v196
    %v335 = vmul.f32 %v333, %v197
    %v336 = vstv %s332
    %v337 = vmul.f32 %v336, %v198
    %v338 = vmul.f32 %v336, %v199
    %v339 = vadd.f32 %v334, %v337
    %v340 = vadd.f32 %v335, %v338
    %s341 = sld [smem:[#allocation2 + $0x1]]
    %s342 = sld [smem:[#allocation2 + $0x32]]
    %v343 = vstv %s341
    %v344 = vmul.f32 %v343, %v222
    %v345 = vmul.f32 %v343, %v223
    %v346 = vstv %s342
    %v347 = vmul.f32 %v346, %v224
    %v348 = vmul.f32 %v346, %v225
    %v349 = vadd.f32 %v344, %v347
    %v350 = vadd.f32 %v345, %v348
    %v351 = vadd.f32 %v339, %v349
    %v352 = vadd.f32 %v340, %v350
    %s353 = sld [smem:[#allocation2 + $0x2]]
    %s354 = sld [smem:[#allocation2 + $0x33]]
    %v355 = vstv %s353
    %v356 = vmul.f32 %v355, %v248
    %v357 = vmul.f32 %v355, %v249
    %v358 = vstv %s354
    %v359 = vmul.f32 %v358, %v250
    %v360 = vmul.f32 %v358, %v251
    %v361 = vadd.f32 %v356, %v359
    %v362 = vadd.f32 %v357, %v360
    %v363 = vadd.f32 %v351, %v361
    %v364 = vadd.f32 %v352, %v362
    %s365 = sld [smem:[#allocation2 + $0x3]]
    %s366 = sld [smem:[#allocation2 + $0x34]]
    %v367 = vstv %s365
    %v368 = vmul.f32 %v367, %v80
    %v369 = vmul.f32 %v367, %v87
    %v370 = vmul.f32 %v367, %v94
    %v371 = vmul.f32 %v367, %v101
    %v372 = vstv %s366
    %v373 = vmul.f32 %v372, %v148
    %v374 = vmul.f32 %v372, %v149
    %v375 = vmul.f32 %v372, %v150
    %v376 = vmul.f32 %v372, %v151
    %v377 = vadd.f32 %v368, %v373
    %v378 = vadd.f32 %v369, %v374
    %v379 = vadd.f32 %v370, %v375
    %v380 = vadd.f32 %v371, %v376
    %v385 = vsel %vm160, %v379, %v377
    %v386 = vsel %vm160, %v380, %v378
    %v389 = vadd.f32 %v363, %v385
    %v390 = vadd.f32 %v364, %v386
    %s391 = sld [smem:[#allocation2 + $0x4]]
    %s392 = sld [smem:[#allocation2 + $0x35]]
    %v393 = vstv %s391
    %v394 = vmul.f32 %v393, %v275
    %v395 = vmul.f32 %v393, %v276
    %v396 = vstv %s392
    %v397 = vmul.f32 %v396, %v277
    %v398 = vmul.f32 %v396, %v278
    %v399 = vadd.f32 %v394, %v397
    %v400 = vadd.f32 %v395, %v398
    %v401 = vadd.f32 %v389, %v399
    %v402 = vadd.f32 %v390, %v400
    %s403 = sld [smem:[#allocation2 + $0x5]]
    %s404 = sld [smem:[#allocation2 + $0x36]]
    %v405 = vstv %s403
    %v406 = vmul.f32 %v405, %v301
    %v407 = vmul.f32 %v405, %v302
    %v408 = vstv %s404
    %v409 = vmul.f32 %v408, %v303
    %v410 = vmul.f32 %v408, %v304
    %v411 = vadd.f32 %v406, %v409
    %v412 = vadd.f32 %v407, %v410
    %v413 = vadd.f32 %v401, %v411
    %v414 = vadd.f32 %v402, %v412
    %s415 = sld [smem:[#allocation2 + $0x6]]
    %s416 = sld [smem:[#allocation2 + $0x37]]
    %v417 = vstv %s415
    %v418 = vmul.f32 %v417, %v327
    %v419 = vmul.f32 %v417, %v328
    %v420 = vstv %s416
    %v421 = vmul.f32 %v420, %v329
    %v422 = vmul.f32 %v420, %v330
    %v423 = vadd.f32 %v418, %v421
    %v424 = vadd.f32 %v419, %v422
    %v425 = vadd.f32 %v413, %v423
    %v426 = vadd.f32 %v414, %v424
    %427 = vrot.lane.b32.xlu0 %v425, 48
    %v428 = vpop.permute.xlu0 %427
    %429 = vrot.lane.b32.xlu0 %v426, 48
    %v430 = vpop.permute.xlu0 %429
    %vm431 = vcmp.lt.s32.totalorder %v154, 48
    %v432 = vsel %vm431, %v428, %v430
    %v433 = vsel %vm431, %v430, %v428
    %vm434 = vcmp.ge.s32.totalorder %v154, 48
    %vm435 = vcmp.ge.s32.totalorder %v155, 48
    %vm436 = vcmp.lt.s32.totalorder %v154, 256
    %vm437 = vcmp.lt.s32.totalorder %v155, 256
    %vm438 = vmand %vm434, %vm436
    %vm439 = vmand %vm435, %vm437
    %v440 = vsel %vm438, 1, 0
    %v441 = vsel %vm439, 1, 0
    %v442 = vcvt.s32.f32 %v440
    %v443 = vcvt.s32.f32 %v441
    %v444 = vmul.f32 %v433, %v442
    %v445 = vmul.f32 %v432, %v443
    %s446 = sld [smem:[#allocation2 + $0x7]]
    %s447 = sld [smem:[#allocation2 + $0x38]]
    %v448 = vstv %s446
    %v449 = vmul.f32 %v448, %v196
    %v450 = vmul.f32 %v448, %v197
    %v451 = vstv %s447
    %v452 = vmul.f32 %v451, %v198
    %v453 = vmul.f32 %v451, %v199
    %v454 = vadd.f32 %v449, %v452
    %v455 = vadd.f32 %v450, %v453
    %s456 = sld [smem:[#allocation2 + $0x8]]
    %s457 = sld [smem:[#allocation2 + $0x39]]
    %v458 = vstv %s456
    %v459 = vmul.f32 %v458, %v222
    %v460 = vmul.f32 %v458, %v223
    %v461 = vstv %s457
    %v462 = vmul.f32 %v461, %v224
    %v463 = vmul.f32 %v461, %v225
    %v464 = vadd.f32 %v459, %v462
    %v465 = vadd.f32 %v460, %v463
    %v466 = vadd.f32 %v454, %v464
    %v467 = vadd.f32 %v455, %v465
    %s468 = sld [smem:[#allocation2 + $0x9]]
    %s469 = sld [smem:[#allocation2 + $0x3a]]
    %v470 = vstv %s468
    %v471 = vmul.f32 %v470, %v248
    %v472 = vmul.f32 %v470, %v249
    %v473 = vstv %s469
    %v474 = vmul.f32 %v473, %v250
    %v475 = vmul.f32 %v473, %v251
    %v476 = vadd.f32 %v471, %v474
    %v477 = vadd.f32 %v472, %v475
    %v478 = vadd.f32 %v466, %v476
    %v479 = vadd.f32 %v467, %v477
    %s480 = sld [smem:[#allocation2 + $0xa]]
    %s481 = sld [smem:[#allocation2 + $0x3b]]
    %v482 = vstv %s480
    %v483 = vmul.f32 %v482, %v80
    %v484 = vmul.f32 %v482, %v87
    %v485 = vmul.f32 %v482, %v94
    %v486 = vmul.f32 %v482, %v101
    %v487 = vstv %s481
    %v488 = vmul.f32 %v487, %v148
    %v489 = vmul.f32 %v487, %v149
    %v490 = vmul.f32 %v487, %v150
    %v491 = vmul.f32 %v487, %v151
    %v492 = vadd.f32 %v483, %v488
    %v493 = vadd.f32 %v484, %v489
    %v494 = vadd.f32 %v485, %v490
    %v495 = vadd.f32 %v486, %v491
    %v500 = vsel %vm160, %v494, %v492
    %v501 = vsel %vm160, %v495, %v493
    %v504 = vadd.f32 %v478, %v500
    %v505 = vadd.f32 %v479, %v501
    %s506 = sld [smem:[#allocation2 + $0xb]]
    %s507 = sld [smem:[#allocation2 + $0x3c]]
    %v508 = vstv %s506
    %v509 = vmul.f32 %v508, %v275
    %v510 = vmul.f32 %v508, %v276
    %v511 = vstv %s507
    %v512 = vmul.f32 %v511, %v277
    %v513 = vmul.f32 %v511, %v278
    %v514 = vadd.f32 %v509, %v512
    %v515 = vadd.f32 %v510, %v513
    %v516 = vadd.f32 %v504, %v514
    %v517 = vadd.f32 %v505, %v515
    %s518 = sld [smem:[#allocation2 + $0xc]]
    %s519 = sld [smem:[#allocation2 + $0x3d]]
    %v520 = vstv %s518
    %v521 = vmul.f32 %v520, %v301
    %v522 = vmul.f32 %v520, %v302
    %v523 = vstv %s519
    %v524 = vmul.f32 %v523, %v303
    %v525 = vmul.f32 %v523, %v304
    %v526 = vadd.f32 %v521, %v524
    %v527 = vadd.f32 %v522, %v525
    %v528 = vadd.f32 %v516, %v526
    %v529 = vadd.f32 %v517, %v527
    %s530 = sld [smem:[#allocation2 + $0xd]]
    %s531 = sld [smem:[#allocation2 + $0x3e]]
    %v532 = vstv %s530
    %v533 = vmul.f32 %v532, %v327
    %v534 = vmul.f32 %v532, %v328
    %v535 = vstv %s531
    %v536 = vmul.f32 %v535, %v329
    %v537 = vmul.f32 %v535, %v330
    %v538 = vadd.f32 %v533, %v536
    %v539 = vadd.f32 %v534, %v537
    %v540 = vadd.f32 %v528, %v538
    %v541 = vadd.f32 %v529, %v539
    %542 = vrot.lane.b32.xlu0 %v540, 32
    %v543 = vpop.permute.xlu0 %542
    %544 = vrot.lane.b32.xlu0 %v541, 32
    %v545 = vpop.permute.xlu0 %544
    %vm546 = vcmp.lt.s32.totalorder %v154, 32
    %v547 = vsel %vm546, %v543, %v545
    %v548 = vsel %vm546, %v545, %v543
    %vm549 = vcmp.ge.s32.totalorder %v154, 32
    %vm550 = vcmp.ge.s32.totalorder %v155, 32
    %vm551 = vmand %vm549, %vm436
    %vm552 = vmand %vm550, %vm437
    %v553 = vsel %vm551, 1, 0
    %v554 = vsel %vm552, 1, 0
    %v555 = vcvt.s32.f32 %v553
    %v556 = vcvt.s32.f32 %v554
    %v557 = vmul.f32 %v548, %v555
    %v558 = vmul.f32 %v547, %v556
    %v559 = vadd.f32 %v444, %v557
    %v560 = vadd.f32 %v445, %v558
    %s561 = sld [smem:[#allocation2 + $0xe]]
    %s562 = sld [smem:[#allocation2 + $0x3f]]
    %v563 = vstv %s561
    %v564 = vmul.f32 %v563, %v196
    %v565 = vmul.f32 %v563, %v197
    %v566 = vstv %s562
    %v567 = vmul.f32 %v566, %v198
    %v568 = vmul.f32 %v566, %v199
    %v569 = vadd.f32 %v564, %v567
    %v570 = vadd.f32 %v565, %v568
    %s571 = sld [smem:[#allocation2 + $0xf]]
    %s572 = sld [smem:[#allocation2 + $0x40]]
    %v573 = vstv %s571
    %v574 = vmul.f32 %v573, %v222
    %v575 = vmul.f32 %v573, %v223
    %v576 = vstv %s572
    %v577 = vmul.f32 %v576, %v224
    %v578 = vmul.f32 %v576, %v225
    %v579 = vadd.f32 %v574, %v577
    %v580 = vadd.f32 %v575, %v578
    %v581 = vadd.f32 %v569, %v579
    %v582 = vadd.f32 %v570, %v580
    %s583 = sld [smem:[#allocation2 + $0x10]]
    %s584 = sld [smem:[#allocation2 + $0x41]]
    %v585 = vstv %s583
    %v586 = vmul.f32 %v585, %v248
    %v587 = vmul.f32 %v585, %v249
    %v588 = vstv %s584
    %v589 = vmul.f32 %v588, %v250
    %v590 = vmul.f32 %v588, %v251
    %v591 = vadd.f32 %v586, %v589
    %v592 = vadd.f32 %v587, %v590
    %v593 = vadd.f32 %v581, %v591
    %v594 = vadd.f32 %v582, %v592
    %s595 = sld [smem:[#allocation2 + $0x11]]
    %s596 = sld [smem:[#allocation2 + $0x42]]
    %v597 = vstv %s595
    %v598 = vmul.f32 %v597, %v80
    %v599 = vmul.f32 %v597, %v87
    %v600 = vmul.f32 %v597, %v94
    %v601 = vmul.f32 %v597, %v101
    %v602 = vstv %s596
    %v603 = vmul.f32 %v602, %v148
    %v604 = vmul.f32 %v602, %v149
    %v605 = vmul.f32 %v602, %v150
    %v606 = vmul.f32 %v602, %v151
    %v607 = vadd.f32 %v598, %v603
    %v608 = vadd.f32 %v599, %v604
    %v609 = vadd.f32 %v600, %v605
    %v610 = vadd.f32 %v601, %v606
    %v615 = vsel %vm160, %v609, %v607
    %v616 = vsel %vm160, %v610, %v608
    %v619 = vadd.f32 %v593, %v615
    %v620 = vadd.f32 %v594, %v616
    %s621 = sld [smem:[#allocation2 + $0x12]]
    %s622 = sld [smem:[#allocation2 + $0x43]]
    %v623 = vstv %s621
    %v624 = vmul.f32 %v623, %v275
    %v625 = vmul.f32 %v623, %v276
    %v626 = vstv %s622
    %v627 = vmul.f32 %v626, %v277
    %v628 = vmul.f32 %v626, %v278
    %v629 = vadd.f32 %v624, %v627
    %v630 = vadd.f32 %v625, %v628
    %v631 = vadd.f32 %v619, %v629
    %v632 = vadd.f32 %v620, %v630
    %s633 = sld [smem:[#allocation2 + $0x13]]
    %s634 = sld [smem:[#allocation2 + $0x44]]
    %v635 = vstv %s633
    %v636 = vmul.f32 %v635, %v301
    %v637 = vmul.f32 %v635, %v302
    %v638 = vstv %s634
    %v639 = vmul.f32 %v638, %v303
    %v640 = vmul.f32 %v638, %v304
    %v641 = vadd.f32 %v636, %v639
    %v642 = vadd.f32 %v637, %v640
    %v643 = vadd.f32 %v631, %v641
    %v644 = vadd.f32 %v632, %v642
    %s645 = sld [smem:[#allocation2 + $0x14]]
    %s646 = sld [smem:[#allocation2 + $0x45]]
    %v647 = vstv %s645
    %v648 = vmul.f32 %v647, %v327
    %v649 = vmul.f32 %v647, %v328
    %v650 = vstv %s646
    %v651 = vmul.f32 %v650, %v329
    %v652 = vmul.f32 %v650, %v330
    %v653 = vadd.f32 %v648, %v651
    %v654 = vadd.f32 %v649, %v652
    %v655 = vadd.f32 %v643, %v653
    %v656 = vadd.f32 %v644, %v654
    %657 = vrot.lane.b32.xlu0 %v655, 16
    %v658 = vpop.permute.xlu0 %657
    %659 = vrot.lane.b32.xlu0 %v656, 16
    %v660 = vpop.permute.xlu0 %659
    %vm661 = vcmp.lt.s32.totalorder %v154, 16
    %v662 = vsel %vm661, %v658, %v660
    %v663 = vsel %vm661, %v660, %v658
    %vm664 = vcmp.ge.s32.totalorder %v154, 16
    %vm665 = vcmp.ge.s32.totalorder %v155, 16
    %vm666 = vmand %vm664, %vm436
    %vm667 = vmand %vm665, %vm437
    %v668 = vsel %vm666, 1, 0
    %v669 = vsel %vm667, 1, 0
    %v670 = vcvt.s32.f32 %v668
    %v671 = vcvt.s32.f32 %v669
    %v672 = vmul.f32 %v663, %v670
    %v673 = vmul.f32 %v662, %v671
    %v674 = vadd.f32 %v559, %v672
    %v675 = vadd.f32 %v560, %v673
    %s676 = sld [smem:[#allocation2 + $0x15]]
    %s677 = sld [smem:[#allocation2 + $0x46]]
    %v678 = vstv %s676
    %v679 = vmul.f32 %v678, %v196
    %v680 = vmul.f32 %v678, %v197
    %v681 = vstv %s677
    %v682 = vmul.f32 %v681, %v198
    %v683 = vmul.f32 %v681, %v199
    %v684 = vadd.f32 %v679, %v682
    %v685 = vadd.f32 %v680, %v683
    %s686 = sld [smem:[#allocation2 + $0x16]]
    %s687 = sld [smem:[#allocation2 + $0x47]]
    %v688 = vstv %s686
    %v689 = vmul.f32 %v688, %v222
    %v690 = vmul.f32 %v688, %v223
    %v691 = vstv %s687
    %v692 = vmul.f32 %v691, %v224
    %v693 = vmul.f32 %v691, %v225
    %v694 = vadd.f32 %v689, %v692
    %v695 = vadd.f32 %v690, %v693
    %v696 = vadd.f32 %v684, %v694
    %v697 = vadd.f32 %v685, %v695
    %s698 = sld [smem:[#allocation2 + $0x17]]
    %s699 = sld [smem:[#allocation2 + $0x48]]
    %v700 = vstv %s698
    %v701 = vmul.f32 %v700, %v248
    %v702 = vmul.f32 %v700, %v249
    %v703 = vstv %s699
    %v704 = vmul.f32 %v703, %v250
    %v705 = vmul.f32 %v703, %v251
    %v706 = vadd.f32 %v701, %v704
    %v707 = vadd.f32 %v702, %v705
    %v708 = vadd.f32 %v696, %v706
    %v709 = vadd.f32 %v697, %v707
    %s710 = sld [smem:[#allocation2 + $0x18]]
    %s711 = sld [smem:[#allocation2 + $0x49]]
    %v712 = vstv %s710
    %v713 = vmul.f32 %v712, %v80
    %v714 = vmul.f32 %v712, %v87
    %v715 = vmul.f32 %v712, %v94
    %v716 = vmul.f32 %v712, %v101
    %v717 = vstv %s711
    %v718 = vmul.f32 %v717, %v148
    %v719 = vmul.f32 %v717, %v149
    %v720 = vmul.f32 %v717, %v150
    %v721 = vmul.f32 %v717, %v151
    %v722 = vadd.f32 %v713, %v718
    %v723 = vadd.f32 %v714, %v719
    %v724 = vadd.f32 %v715, %v720
    %v725 = vadd.f32 %v716, %v721
    %v730 = vsel %vm160, %v724, %v722
    %v731 = vsel %vm160, %v725, %v723
    %v734 = vadd.f32 %v708, %v730
    %v735 = vadd.f32 %v709, %v731
    %s736 = sld [smem:[#allocation2 + $0x19]]
    %s737 = sld [smem:[#allocation2 + $0x4a]]
    %v738 = vstv %s736
    %v739 = vmul.f32 %v738, %v275
    %v740 = vmul.f32 %v738, %v276
    %v741 = vstv %s737
    %v742 = vmul.f32 %v741, %v277
    %v743 = vmul.f32 %v741, %v278
    %v744 = vadd.f32 %v739, %v742
    %v745 = vadd.f32 %v740, %v743
    %v746 = vadd.f32 %v734, %v744
    %v747 = vadd.f32 %v735, %v745
    %s748 = sld [smem:[#allocation2 + $0x1a]]
    %s749 = sld [smem:[#allocation2 + $0x4b]]
    %v750 = vstv %s748
    %v751 = vmul.f32 %v750, %v301
    %v752 = vmul.f32 %v750, %v302
    %v753 = vstv %s749
    %v754 = vmul.f32 %v753, %v303
    %v755 = vmul.f32 %v753, %v304
    %v756 = vadd.f32 %v751, %v754
    %v757 = vadd.f32 %v752, %v755
    %v758 = vadd.f32 %v746, %v756
    %v759 = vadd.f32 %v747, %v757
    %s760 = sld [smem:[#allocation2 + $0x1b]]
    %s761 = sld [smem:[#allocation2 + $0x4c]]
    %v762 = vstv %s760
    %v763 = vmul.f32 %v762, %v327
    %v764 = vmul.f32 %v762, %v328
    %v765 = vstv %s761
    %v766 = vmul.f32 %v765, %v329
    %v767 = vmul.f32 %v765, %v330
    %v768 = vadd.f32 %v763, %v766
    %v769 = vadd.f32 %v764, %v767
    %v770 = vadd.f32 %v758, %v768
    %v771 = vadd.f32 %v759, %v769
    %v772 = vadd.f32 %v674, %v770
    %v773 = vadd.f32 %v675, %v771
    %s774 = sld [smem:[#allocation2 + $0x1c]]
    %s775 = sld [smem:[#allocation2 + $0x4d]]
    %v776 = vstv %s774
    %v777 = vmul.f32 %v776, %v196
    %v778 = vmul.f32 %v776, %v197
    %v779 = vstv %s775
    %v780 = vmul.f32 %v779, %v198
    %v781 = vmul.f32 %v779, %v199
    %v782 = vadd.f32 %v777, %v780
    %v783 = vadd.f32 %v778, %v781
    %s784 = sld [smem:[#allocation2 + $0x1d]]
    %s785 = sld [smem:[#allocation2 + $0x4e]]
    %v786 = vstv %s784
    %v787 = vmul.f32 %v786, %v222
    %v788 = vmul.f32 %v786, %v223
    %v789 = vstv %s785
    %v790 = vmul.f32 %v789, %v224
    %v791 = vmul.f32 %v789, %v225
    %v792 = vadd.f32 %v787, %v790
    %v793 = vadd.f32 %v788, %v791
    %v794 = vadd.f32 %v782, %v792
    %v795 = vadd.f32 %v783, %v793
    %s796 = sld [smem:[#allocation2 + $0x1e]]
    %s797 = sld [smem:[#allocation2 + $0x4f]]
    %v798 = vstv %s796
    %v799 = vmul.f32 %v798, %v248
    %v800 = vmul.f32 %v798, %v249
    %v801 = vstv %s797
    %v802 = vmul.f32 %v801, %v250
    %v803 = vmul.f32 %v801, %v251
    %v804 = vadd.f32 %v799, %v802
    %v805 = vadd.f32 %v800, %v803
    %v806 = vadd.f32 %v794, %v804
    %v807 = vadd.f32 %v795, %v805
    %s808 = sld [smem:[#allocation2 + $0x1f]]
    %s809 = sld [smem:[#allocation2 + $0x50]]
    %v810 = vstv %s808
    %v811 = vmul.f32 %v810, %v80
    %v812 = vmul.f32 %v810, %v87
    %v813 = vmul.f32 %v810, %v94
    %v814 = vmul.f32 %v810, %v101
    %v815 = vstv %s809
    %v816 = vmul.f32 %v815, %v148
    %v817 = vmul.f32 %v815, %v149
    %v818 = vmul.f32 %v815, %v150
    %v819 = vmul.f32 %v815, %v151
    %v820 = vadd.f32 %v811, %v816
    %v821 = vadd.f32 %v812, %v817
    %v822 = vadd.f32 %v813, %v818
    %v823 = vadd.f32 %v814, %v819
    %v828 = vsel %vm160, %v822, %v820
    %v829 = vsel %vm160, %v823, %v821
    %v832 = vadd.f32 %v806, %v828
    %v833 = vadd.f32 %v807, %v829
    %s834 = sld [smem:[#allocation2 + $0x20]]
    %s835 = sld [smem:[#allocation2 + $0x51]]
    %v836 = vstv %s834
    %v837 = vmul.f32 %v836, %v275
    %v838 = vmul.f32 %v836, %v276
    %v839 = vstv %s835
    %v840 = vmul.f32 %v839, %v277
    %v841 = vmul.f32 %v839, %v278
    %v842 = vadd.f32 %v837, %v840
    %v843 = vadd.f32 %v838, %v841
    %v844 = vadd.f32 %v832, %v842
    %v845 = vadd.f32 %v833, %v843
    %s846 = sld [smem:[#allocation2 + $0x21]]
    %s847 = sld [smem:[#allocation2 + $0x52]]
    %v848 = vstv %s846
    %v849 = vmul.f32 %v848, %v301
    %v850 = vmul.f32 %v848, %v302
    %v851 = vstv %s847
    %v852 = vmul.f32 %v851, %v303
    %v853 = vmul.f32 %v851, %v304
    %v854 = vadd.f32 %v849, %v852
    %v855 = vadd.f32 %v850, %v853
    %v856 = vadd.f32 %v844, %v854
    %v857 = vadd.f32 %v845, %v855
    %s858 = sld [smem:[#allocation2 + $0x22]]
    %s859 = sld [smem:[#allocation2 + $0x53]]
    %v860 = vstv %s858
    %v861 = vmul.f32 %v860, %v327
    %v862 = vmul.f32 %v860, %v328
    %v863 = vstv %s859
    %v864 = vmul.f32 %v863, %v329
    %v865 = vmul.f32 %v863, %v330
    %v866 = vadd.f32 %v861, %v864
    %v867 = vadd.f32 %v862, %v865
    %v868 = vadd.f32 %v856, %v866
    %v869 = vadd.f32 %v857, %v867
    %870 = vrot.lane.b32.xlu0 %v868, 112
    %v871 = vpop.permute.xlu0 %870
    %872 = vrot.lane.b32.xlu0 %v869, 112
    %v873 = vpop.permute.xlu0 %872
    %vm874 = vcmp.lt.s32.totalorder %v154, 112
    %v875 = vsel %vm874, %v871, %v873
    %v876 = vsel %vm874, %v873, %v871
    %vm877 = vcmp.ge.s32.totalorder %v154, 0
    %vm878 = vcmp.ge.s32.totalorder %v155, 0
    %vm879 = vcmp.lt.s32.totalorder %v154, 240
    %vm880 = vcmp.lt.s32.totalorder %v155, 240
    %vm881 = vmand %vm877, %vm879
    %vm882 = vmand %vm878, %vm880
    %v883 = vsel %vm881, 1, 0
    %v884 = vsel %vm882, 1, 0
    %v885 = vcvt.s32.f32 %v883
    %v886 = vcvt.s32.f32 %v884
    %v887 = vmul.f32 %v875, %v885
    %v888 = vmul.f32 %v876, %v886
    %v889 = vadd.f32 %v772, %v887
    %v890 = vadd.f32 %v773, %v888
    %s891 = sld [smem:[#allocation2 + $0x23]]
    %s892 = sld [smem:[#allocation2 + $0x54]]
    %v893 = vstv %s891
    %v894 = vmul.f32 %v893, %v196
    %v895 = vmul.f32 %v893, %v197
    %v896 = vstv %s892
    %v897 = vmul.f32 %v896, %v198
    %v898 = vmul.f32 %v896, %v199
    %v899 = vadd.f32 %v894, %v897
    %v900 = vadd.f32 %v895, %v898
    %s901 = sld [smem:[#allocation2 + $0x24]]
    %s902 = sld [smem:[#allocation2 + $0x55]]
    %v903 = vstv %s901
    %v904 = vmul.f32 %v903, %v222
    %v905 = vmul.f32 %v903, %v223
    %v906 = vstv %s902
    %v907 = vmul.f32 %v906, %v224
    %v908 = vmul.f32 %v906, %v225
    %v909 = vadd.f32 %v904, %v907
    %v910 = vadd.f32 %v905, %v908
    %v911 = vadd.f32 %v899, %v909
    %v912 = vadd.f32 %v900, %v910
    %s913 = sld [smem:[#allocation2 + $0x25]]
    %s914 = sld [smem:[#allocation2 + $0x56]]
    %v915 = vstv %s913
    %v916 = vmul.f32 %v915, %v248
    %v917 = vmul.f32 %v915, %v249
    %v918 = vstv %s914
    %v919 = vmul.f32 %v918, %v250
    %v920 = vmul.f32 %v918, %v251
    %v921 = vadd.f32 %v916, %v919
    %v922 = vadd.f32 %v917, %v920
    %v923 = vadd.f32 %v911, %v921
    %v924 = vadd.f32 %v912, %v922
    %s925 = sld [smem:[#allocation2 + $0x26]]
    %s926 = sld [smem:[#allocation2 + $0x57]]
    %v927 = vstv %s925
    %v928 = vmul.f32 %v927, %v80
    %v929 = vmul.f32 %v927, %v87
    %v930 = vmul.f32 %v927, %v94
    %v931 = vmul.f32 %v927, %v101
    %v932 = vstv %s926
    %v933 = vmul.f32 %v932, %v148
    %v934 = vmul.f32 %v932, %v149
    %v935 = vmul.f32 %v932, %v150
    %v936 = vmul.f32 %v932, %v151
    %v937 = vadd.f32 %v928, %v933
    %v938 = vadd.f32 %v929, %v934
    %v939 = vadd.f32 %v930, %v935
    %v940 = vadd.f32 %v931, %v936
    %v945 = vsel %vm160, %v939, %v937
    %v946 = vsel %vm160, %v940, %v938
    %v949 = vadd.f32 %v923, %v945
    %v950 = vadd.f32 %v924, %v946
    %s951 = sld [smem:[#allocation2 + $0x27]]
    %s952 = sld [smem:[#allocation2 + $0x58]]
    %v953 = vstv %s951
    %v954 = vmul.f32 %v953, %v275
    %v955 = vmul.f32 %v953, %v276
    %v956 = vstv %s952
    %v957 = vmul.f32 %v956, %v277
    %v958 = vmul.f32 %v956, %v278
    %v959 = vadd.f32 %v954, %v957
    %v960 = vadd.f32 %v955, %v958
    %v961 = vadd.f32 %v949, %v959
    %v962 = vadd.f32 %v950, %v960
    %s963 = sld [smem:[#allocation2 + $0x28]]
    %s964 = sld [smem:[#allocation2 + $0x59]]
    %v965 = vstv %s963
    %v966 = vmul.f32 %v965, %v301
    %v967 = vmul.f32 %v965, %v302
    %v968 = vstv %s964
    %v969 = vmul.f32 %v968, %v303
    %v970 = vmul.f32 %v968, %v304
    %v971 = vadd.f32 %v966, %v969
    %v972 = vadd.f32 %v967, %v970
    %v973 = vadd.f32 %v961, %v971
    %v974 = vadd.f32 %v962, %v972
    %s975 = sld [smem:[#allocation2 + $0x29]]
    %s976 = sld [smem:[#allocation2 + $0x5a]]
    %v977 = vstv %s975
    %v978 = vmul.f32 %v977, %v327
    %v979 = vmul.f32 %v977, %v328
    %v980 = vstv %s976
    %v981 = vmul.f32 %v980, %v329
    %v982 = vmul.f32 %v980, %v330
    %v983 = vadd.f32 %v978, %v981
    %v984 = vadd.f32 %v979, %v982
    %v985 = vadd.f32 %v973, %v983
    %v986 = vadd.f32 %v974, %v984
    %987 = vrot.lane.b32.xlu0 %v985, 96
    %v988 = vpop.permute.xlu0 %987
    %989 = vrot.lane.b32.xlu0 %v986, 96
    %v990 = vpop.permute.xlu0 %989
    %vm991 = vcmp.lt.s32.totalorder %v154, 96
    %v992 = vsel %vm991, %v988, %v990
    %v993 = vsel %vm991, %v990, %v988
    %vm994 = vcmp.lt.s32.totalorder %v154, 224
    %vm995 = vcmp.lt.s32.totalorder %v155, 224
    %vm996 = vmand %vm877, %vm994
    %vm997 = vmand %vm878, %vm995
    %v998 = vsel %vm996, 1, 0
    %v999 = vsel %vm997, 1, 0
    %v1000 = vcvt.s32.f32 %v998
    %v1001 = vcvt.s32.f32 %v999
    %v1002 = vmul.f32 %v992, %v1000
    %v1003 = vmul.f32 %v993, %v1001
    %v1004 = vadd.f32 %v889, %v1002
    %v1005 = vadd.f32 %v890, %v1003
    %s1006 = sld [smem:[#allocation2 + $0x2a]]
    %s1007 = sld [smem:[#allocation2 + $0x5b]]
    %v1008 = vstv %s1006
    %v1009 = vmul.f32 %v1008, %v196
    %v1010 = vmul.f32 %v1008, %v197
    %v1011 = vstv %s1007
    %v1012 = vmul.f32 %v1011, %v198
    %v1013 = vmul.f32 %v1011, %v199
    %v1014 = vadd.f32 %v1009, %v1012
    %v1015 = vadd.f32 %v1010, %v1013
    %s1016 = sld [smem:[#allocation2 + $0x2b]]
    %s1017 = sld [smem:[#allocation2 + $0x5c]]
    %v1018 = vstv %s1016
    %v1019 = vmul.f32 %v1018, %v222
    %v1020 = vmul.f32 %v1018, %v223
    %v1021 = vstv %s1017
    %v1022 = vmul.f32 %v1021, %v224
    %v1023 = vmul.f32 %v1021, %v225
    %v1024 = vadd.f32 %v1019, %v1022
    %v1025 = vadd.f32 %v1020, %v1023
    %v1026 = vadd.f32 %v1014, %v1024
    %v1027 = vadd.f32 %v1015, %v1025
    %s1028 = sld [smem:[#allocation2 + $0x2c]]
    %s1029 = sld [smem:[#allocation2 + $0x5d]]
    %v1030 = vstv %s1028
    %v1031 = vmul.f32 %v1030, %v248
    %v1032 = vmul.f32 %v1030, %v249
    %v1033 = vstv %s1029
    %v1034 = vmul.f32 %v1033, %v250
    %v1035 = vmul.f32 %v1033, %v251
    %v1036 = vadd.f32 %v1031, %v1034
    %v1037 = vadd.f32 %v1032, %v1035
    %v1038 = vadd.f32 %v1026, %v1036
    %v1039 = vadd.f32 %v1027, %v1037
    %s1040 = sld [smem:[#allocation2 + $0x2d]]
    %s1041 = sld [smem:[#allocation2 + $0x5e]]
    %v1042 = vstv %s1040
    %v1043 = vmul.f32 %v1042, %v80
    %v1044 = vmul.f32 %v1042, %v87
    %v1045 = vmul.f32 %v1042, %v94
    %v1046 = vmul.f32 %v1042, %v101
    %v1047 = vstv %s1041
    %v1048 = vmul.f32 %v1047, %v148
    %v1049 = vmul.f32 %v1047, %v149
    %v1050 = vmul.f32 %v1047, %v150
    %v1051 = vmul.f32 %v1047, %v151
    %v1052 = vadd.f32 %v1043, %v1048
    %v1053 = vadd.f32 %v1044, %v1049
    %v1054 = vadd.f32 %v1045, %v1050
    %v1055 = vadd.f32 %v1046, %v1051
    %v1060 = vsel %vm160, %v1054, %v1052
    %v1061 = vsel %vm160, %v1055, %v1053
    %v1064 = vadd.f32 %v1038, %v1060
    %v1065 = vadd.f32 %v1039, %v1061
    %s1066 = sld [smem:[#allocation2 + $0x2e]]
    %s1067 = sld [smem:[#allocation2 + $0x5f]]
    %v1068 = vstv %s1066
    %v1069 = vmul.f32 %v1068, %v275
    %v1070 = vmul.f32 %v1068, %v276
    %v1071 = vstv %s1067
    %v1072 = vmul.f32 %v1071, %v277
    %v1073 = vmul.f32 %v1071, %v278
    %v1074 = vadd.f32 %v1069, %v1072
    %v1075 = vadd.f32 %v1070, %v1073
    %v1076 = vadd.f32 %v1064, %v1074
    %v1077 = vadd.f32 %v1065, %v1075
    %s1078 = sld [smem:[#allocation2 + $0x2f]]
    %s1079 = sld [smem:[#allocation2 + $0x60]]
    %v1080 = vstv %s1078
    %v1081 = vmul.f32 %v1080, %v301
    %v1082 = vmul.f32 %v1080, %v302
    %v1083 = vstv %s1079
    %v1084 = vmul.f32 %v1083, %v303
    %v1085 = vmul.f32 %v1083, %v304
    %v1086 = vadd.f32 %v1081, %v1084
    %v1087 = vadd.f32 %v1082, %v1085
    %v1088 = vadd.f32 %v1076, %v1086
    %v1089 = vadd.f32 %v1077, %v1087
    %s1090 = sld [smem:[#allocation2 + $0x30]]
    %s1091 = sld [smem:[#allocation2 + $0x61]]
    %v1092 = vstv %s1090
    %v1093 = vmul.f32 %v1092, %v327
    %v1094 = vmul.f32 %v1092, %v328
    %v1095 = vstv %s1091
    %v1096 = vmul.f32 %v1095, %v329
    %v1097 = vmul.f32 %v1095, %v330
    %v1098 = vadd.f32 %v1093, %v1096
    %v1099 = vadd.f32 %v1094, %v1097
    %v1100 = vadd.f32 %v1088, %v1098
    %v1101 = vadd.f32 %v1089, %v1099
    %1102 = vrot.lane.b32.xlu0 %v1100, 80
    %v1103 = vpop.permute.xlu0 %1102
    %1104 = vrot.lane.b32.xlu0 %v1101, 80
    %v1105 = vpop.permute.xlu0 %1104
    %vm1106 = vcmp.lt.s32.totalorder %v154, 80
    %v1107 = vsel %vm1106, %v1103, %v1105
    %v1108 = vsel %vm1106, %v1105, %v1103
    %vm1109 = vcmp.lt.s32.totalorder %v154, 208
    %vm1110 = vcmp.lt.s32.totalorder %v155, 208
    %vm1111 = vmand %vm877, %vm1109
    %vm1112 = vmand %vm878, %vm1110
    %v1113 = vsel %vm1111, 1, 0
    %v1114 = vsel %vm1112, 1, 0
    %v1115 = vcvt.s32.f32 %v1113
    %v1116 = vcvt.s32.f32 %v1114
    %v1117 = vmul.f32 %v1107, %v1115
    %v1118 = vmul.f32 %v1108, %v1116
    %v1119 = vadd.f32 %v1004, %v1117
    %v1120 = vadd.f32 %v1005, %v1118
    %s1121 = sld [smem:[#allocation2 + $0x62]]
    %v1122 = vstv %s1121
    %v1123 = vadd.f32 %v1119, %v1122
    %v1124 = vadd.f32 %v1120, %v1122
    %v1125 = vxor.u32 %v1123, 2147483648
    %v1126 = vxor.u32 %v1124, 2147483648
    %v1127 = vmul.f32 %v1125, 1.442695
    %v1128 = vpow.pop %v1127
    %v1129 = vmul.f32 %v1126, 1.442695
    %v1130 = vpow.pop %v1129
    %v1131 = vadd.f32 %v1128, 1.0
    %v1132 = vadd.f32 %v1130, 1.0
    %v1133 = vrcp.pop %v1131
    %v1134 = vmul.f32 %v1131, %v1133
    %v1135 = vsub.f32 1.0, %v1134
    %v1136 = vmul.f32 %v1133, %v1135
    %v1137 = vadd.f32 %v1133, %v1136
    %vm1138 = vweird.f32 %v1131
    %vm1139 = vweird.f32 %v1133
    %vm1140 = vmor %vm1138, %vm1139
    %v1141 = vsel %vm1140, %v1133, %v1137
    %v1142 = vand.u32 2147483647, %v1131
    %vm1143 = vcmp.eq.f32.partialorder %v1142, 8.507059e+37
    %v1144 = vand.u32 %v1131, 2147483648
    %v1145 = vor.u32 1.1754944e-38, %v1144
    %v1146 = vsel %vm1143, %v1145, %v1141
    %v1147 = vmul.f32 1.0, %v1146
    %v1148 = vrcp.pop %v1132
    %v1149 = vmul.f32 %v1132, %v1148
    %v1150 = vsub.f32 1.0, %v1149
    %v1151 = vmul.f32 %v1148, %v1150
    %v1152 = vadd.f32 %v1148, %v1151
    %vm1153 = vweird.f32 %v1132
    %vm1154 = vweird.f32 %v1148
    %vm1155 = vmor %vm1153, %vm1154
    %v1156 = vsel %vm1155, %v1148, %v1152
    %v1157 = vand.u32 2147483647, %v1132
    %vm1158 = vcmp.eq.f32.partialorder %v1157, 8.507059e+37
    %v1159 = vand.u32 %v1132, 2147483648
    %v1160 = vor.u32 1.1754944e-38, %v1159
    %v1161 = vsel %vm1158, %v1160, %v1156
    %v1162 = vmul.f32 1.0, %v1161
    %v1165 = vrot.slane %v1162, 7
    %vm1166 = vcmask 1040384
    %v1167 = vsel %vm1166, %v1147, %v1165
    %v1168 = vsel %vm160, %v1147, %v1165
    %v1169 = vrot.slane %v1168, 1
    %v1170 = vperm.slane %v1167, 0
    %v1171 = vperm.slane %v1167, 1
    %v1172 = vperm.slane %v1169, 0
    %v1173 = vperm.slane %v1169, 1
    %v1174 = vrot.slane %v1171, 4
    %v1175 = vrot.slane %v1173, 4
    %v1176 = vsel %vm73, %v1170, %v1174
    %v1177 = vsel %vm73, %v1172, %v1175
    %v1180 = vmul.f32 %v58, %v1176
    %v1181 = vmul.f32 %v59, %v1177
    %1182 = vst [vmem:[#allocation9] sm:$0xff] %v1180
    %1183 = vst [vmem:[#allocation9 + $0x8] sm:$0xff] %v1181
    // Predicated region
    $region26: #{tpu_custom_call.1} parent=1 // pred_check
      _
    $region27: #{tpu_custom_call.1} parent=1 // pred_check_branch
      %1185 = sbr.rel (0) target = $region29
    $region28: #{tpu_custom_call.1} parent=1 // pred_region
      %1187 = vsyncadd [#allocation4], 0
      %s1188 = sshll.u32 [#allocation9], 4
      %s1189 = int_to_ptr.vmem [resolvable:$true] %s1188
      %s1190 = sshll.u32 %s3, 4
      %s1191 = int_to_ptr.hbm [resolvable:$true] %s1190
      %1196 = dma.vmem_to_hbm [thread:$0]  %s1189, 256, %s1191, [#allocation4], 128, 128, 8
    $region29: #{tpu_custom_call.1} parent=1 // pred_fallthru
      _
    // Predicated region
    $region30: #{tpu_custom_call.1} parent=1 // pred_check
      _
    $region31: #{tpu_custom_call.1} parent=1 // pred_check_branch
      %1198 = sbr.rel (0) target = $region33
    $region32: #{tpu_custom_call.1} parent=1 // pred_region
      %1200 = dma.done [#allocation4], 256
    $region33: #{tpu_custom_call.1} parent=1 // pred_fallthru
      _
    %1201 = vsyncpa [#allocation3], 1
    %1202 = vsyncpa [#allocation8], 1
    %1203 = vsyncpa [#allocation4], 1
    %1204 = vsyncpa [#allocation5], 1

</llo_original>
